<compile_context>
chip_gen: v5e
topology: v5e:2x2
jax: 0.10.0
libtpu: 0.0.40
codegen_flags: <defaults>
</compile_context>

<pallas_src>
import math
from functools import partial

import jax
import jax.numpy as jnp
from jax.experimental import pallas as pl
from jax.experimental.pallas import tpu as pltpu

# --------------------------------------------------------------------------- #
# Tunables (re-derive per generation; v5e/v6e can push larger row tiles under
# 128 MiB VMEM, v7x (64 MiB) is comfortable at these settings for STGCN shapes).
# --------------------------------------------------------------------------- #
ROW_TILE = 1024                    # spatial matmul row tile
BN_ROW_TILE = 512                  # BN normalize row tile (lane dim is T*N)
MXU_DTYPE = jnp.bfloat16           # MXU operand dtype (f32 accumulation kept)
INTERMEDIATE_DTYPE = jnp.bfloat16  # dtype of the g1 HBM intermediate
VMEM_LIMIT = 48 * 1024 * 1024      # < v7x's 64 MiB physical per TensorCore


def _cparams(semantics):
    return pltpu.CompilerParams(dimension_semantics=semantics,
                                vmem_limit_bytes=VMEM_LIMIT)


# --------------------------------------------------------------------------- #
# Fused TemporalConvLayer kernel: kt=3 taps + GLU + residual in one MXU dot.
# Rows = output channels, lanes = T*N (lane-dense output).
# --------------------------------------------------------------------------- #
def _tconv_glu_kernel(x_ref, w_ref, b_ref, *out_refs,
                      n_nodes, t_in, c_out, emit_stats):
    """x_ref: (1, c_in, T*N) f32 (unpadded)     w_ref: (2*c_out, 3*c_in) MXU_DTYPE
    b_ref: (2*c_out, 1) f32                     out_refs[0]: (1, c_out, T*N) f32
    If emit_stats: out_refs[1:] = per-batch per-node (sum, sumsq), each (1,1,N).
    The residual (identity / padded identity / conv_reshape) is pre-folded into
    the P half of w_ref / b_ref, so the epilogue is just p * sigmoid(q)."""
    o_ref = out_refs[0]
    tn = t_in * n_nodes
    c_in = x_ref.shape[1]
    x = x_ref[0]                                            # (c_in, T*N) f32
    zpad = jnp.zeros((c_in, n_nodes), x.dtype)
    # Time zero-padding handled in-register (no HBM-side jnp.pad round trip):
    x_prev = jnp.concatenate([zpad, x[:, : tn - n_nodes]], axis=1)   # X[t-1]
    x_next = jnp.concatenate([x[:, n_nodes:], zpad], axis=1)         # X[t+1]
    xcat = jnp.concatenate([x_prev, x, x_next], axis=0).astype(MXU_DTYPE)
    # Single MXU dot over K = kt*c_in (residual rides along in the P-half rows).
    z = jnp.dot(w_ref[...], xcat, preferred_element_type=jnp.float32) + b_ref[...]
    p = z[:c_out]
    q = z[c_out:]
    y = p * (1.0 / (1.0 + jnp.exp(-q)))        # exact sigmoid (EUP exp + recip)
    o_ref[0] = y
    if emit_stats:
        # Per-node partial BatchNorm statistics (fused: no extra HBM stats read).
        sum_ref, ssq_ref = out_refs[1], out_refs[2]
        s1 = jnp.sum(y, axis=0, keepdims=True)              # (1, T*N)
        q1 = jnp.sum(y * y, axis=0, keepdims=True)
        s_node = jnp.zeros((1, n_nodes), jnp.float32)
        q_node = jnp.zeros((1, n_nodes), jnp.float32)
        for t in range(t_in):                                # static, small (= T)
            s_node = s_node + s1[:, t * n_nodes:(t + 1) * n_nodes]
            q_node = q_node + q1[:, t * n_nodes:(t + 1) * n_nodes]
        sum_ref[0] = s_node
        ssq_ref[0] = q_node


def temporal_conv_layer(x, conv1_w, conv1_b, conv_reshape_w=None,
                        conv_reshape_b=None, *, kt=3, emit_node_stats=False):
    """TemporalConvLayer forward.  x: (B, c_in, T, N) -> (B, c_out, T, N).
    With emit_node_stats also returns per-node (sum, sumsq) over (B, c_out, T)."""
    B, c_in, T, N = x.shape
    c2 = conv1_w.shape[0]
    c_out = c2 // 2
    assert kt == 3 and conv1_w.shape[2] == kt, "kernel assumes kt=3 / padding=(1,0)"
    tn = T * N
    xf = x.reshape(B, c_in, tn)                     # free row-major reshape

    # Conv2d weight (c2, c_in, kt, 1) -> (c2, kt*c_in), column = dt*c_in + ci
    # (matches xcat row ordering in the kernel: [X[t-1]; X[t]; X[t+1]]).
    w2d = jnp.transpose(conv1_w[:, :, :, 0], (0, 2, 1)).reshape(c2, kt * c_in)
    bias = conv1_b
    if c_in > c_out:
        # residual = conv_reshape(X): identical temporal structure -> merge into P half.
        wr = jnp.transpose(conv_reshape_w[:, :, :, 0], (0, 2, 1)).reshape(c_out, kt * c_in)
        w2d = w2d.at[:c_out, :].add(wr)
        bias = bias.at[:c_out].add(conv_reshape_b)
    else:
        if c_in < c_out:
            # Match the reference's round()/parity formula exactly.
            n_pad = round((c_out - c_in) / 2)
            pad_lo, pad_hi = (n_pad, n_pad - 1) if (c_in % 2 != 0) else (n_pad, n_pad)
            assert pad_lo + c_in + pad_hi == c_out, "unsupported channel-pad config"
        else:
            pad_lo = 0
        # residual = (channel-padded) identity, folded in at the un-shifted tap (dt=1).
        w2d = w2d.at[pad_lo:pad_lo + c_in, c_in:2 * c_in].add(
            jnp.eye(c_in, dtype=w2d.dtype))
    w2d = w2d.astype(MXU_DTYPE)
    bias = bias.reshape(c2, 1).astype(jnp.float32)

    out_shape = [jax.ShapeDtypeStruct((B, c_out, tn), jnp.float32)]
    out_specs = [pl.BlockSpec((1, c_out, tn), lambda b: (b, 0, 0))]
    if emit_node_stats:
        out_shape += [jax.ShapeDtypeStruct((B, 1, N), jnp.float32)] * 2
        out_specs += [pl.BlockSpec((1, 1, N), lambda b: (b, 0, 0)),
                      pl.BlockSpec((1, 1, N), lambda b: (b, 0, 0))]

    # TODO(synk): for very small B on v7x, add a second (lane-halo) grid axis so
    # each TensorCore sees >= 8 pipeline steps; B >= 8 already pipelines fine.
    results = pl.pallas_call(
        partial(_tconv_glu_kernel, n_nodes=N, t_in=T, c_out=c_out,
                emit_stats=emit_node_stats),
        out_shape=tuple(out_shape),
        grid=(B,),
        in_specs=[pl.BlockSpec((1, c_in, tn), lambda b: (b, 0, 0)),
                  pl.BlockSpec((c2, kt * c_in), lambda b: (0, 0)),
                  pl.BlockSpec((c2, 1), lambda b: (0, 0))],
        out_specs=tuple(out_specs),
        compiler_params=_cparams(("parallel",)),
    )(xf, w2d, bias)

    out = results[0].reshape(B, c_out, T, N)
    if not emit_node_stats:
        return out
    node_sum = jnp.sum(results[1], axis=0)          # (1, N): tiny XLA reduce over B
    node_ssq = jnp.sum(results[2], axis=0)
    return out, node_sum, node_ssq


# --------------------------------------------------------------------------- #
# Row-tiled matmul kernels for the spatial (graph) conv
# --------------------------------------------------------------------------- #
def _matmul_kernel(x_ref, w_ref, o_ref):
    o_ref[...] = jnp.dot(x_ref[...].astype(MXU_DTYPE), w_ref[...],
                         preferred_element_type=jnp.float32).astype(o_ref.dtype)


def _matmul_res_relu_kernel(x_ref, w_ref, r_ref, o_ref):
    acc = jnp.dot(x_ref[...].astype(MXU_DTYPE), w_ref[...],
                  preferred_element_type=jnp.float32)
    o_ref[...] = jnp.maximum(acc + r_ref[...], 0.0).astype(o_ref.dtype)


def _row_tiling(m, target):
    """Row tile + padded row count.  Prefer a tile that divides m exactly so no
    pad + depad HBM copies are needed; never a single full-M block for large M."""
    if m <= target:
        return m, m
    lo = max(target // 4, 8)
    for tile in range(target, lo - 1, -8):
        if m % tile == 0:
            return tile, m
    return target, pl.cdiv(m, target) * target


def _pad_rows(x, mp):
    m = x.shape[0]
    if m == mp:
        return x
    return jnp.pad(x, ((0, mp - m),) + ((0, 0),) * (x.ndim - 1))


def matmul(x, w, *, out_dtype=jnp.float32, row_tile=ROW_TILE):
    """(M, K) @ (K, N), no bias (the reference spmm has none)."""
    m, k = x.shape
    n = w.shape[1]
    w = w.astype(MXU_DTYPE)
    tile, mp = _row_tiling(m, row_tile)
    out = pl.pallas_call(
        _matmul_kernel,
        out_shape=jax.ShapeDtypeStruct((mp, n), out_dtype),
        grid=(mp // tile,),
        in_specs=[pl.BlockSpec((tile, k), lambda i: (i, 0)),
                  pl.BlockSpec((k, n), lambda i: (0, 0))],
        out_specs=pl.BlockSpec((tile, n), lambda i: (i, 0)),
        compiler_params=_cparams(("parallel",)),
    )(_pad_rows(x, mp), w)
    return out[:m] if mp != m else out


def matmul_res_relu(x, w, res, *, out_dtype=jnp.float32, row_tile=ROW_TILE):
    """relu((M,K) @ (K,N) + res) with the residual add + ReLU fused in-kernel."""
    m, k = x.shape
    n = w.shape[1]
    w = w.astype(MXU_DTYPE)
    tile, mp = _row_tiling(m, row_tile)
    out = pl.pallas_call(
        _matmul_res_relu_kernel,
        out_shape=jax.ShapeDtypeStruct((mp, n), out_dtype),
        grid=(mp // tile,),
        in_specs=[pl.BlockSpec((tile, k), lambda i: (i, 0)),
                  pl.BlockSpec((k, n), lambda i: (0, 0)),
                  pl.BlockSpec((tile, n), lambda i: (i, 0))],
        out_specs=pl.BlockSpec((tile, n), lambda i: (i, 0)),
        compiler_params=_cparams(("parallel",)),
    )(_pad_rows(x, mp), w, _pad_rows(res, mp))
    return out[:m] if mp != m else out


def spatial_conv_layer(x, graph_kernel, theta, *, ks=5):
    """SpatialConvLayer forward (c_in == c_out -> identity residual).  x: (B,C,T,N)."""
    B, C, T, N = x.shape
    # graph_conv, replicating the reference's literal row-major reshapes.
    # TODO(synk): lane-padding N to 128 and fusing/padding the narrow (M, C)
    # second-matmul output are blocked by the reference's row-scrambling
    # reshape(-1, ks*C), whose numerics depend on the true N / contiguity.
    g1 = matmul(x.reshape(-1, N), graph_kernel,
                out_dtype=INTERMEDIATE_DTYPE)              # (B*C*T, ks*N), bf16 in HBM
    x3 = g1.reshape(-1, C * ks)                            # literal (scrambling) reshape
    res = x.reshape(-1, C)                                 # X in the same flat order
    out = matmul_res_relu(x3, theta, res)                  # relu(graph_conv + X), fused
    return out.reshape(B, C, T, N)                         # literal reshape (free)


# --------------------------------------------------------------------------- #
# BatchNorm2d(n_nodes), training mode, default affine (weight=1, bias=0).
# Statistics come fused from the tconv2 epilogue; this is a single lane-dense
# normalize pass over the (B*C, T*N) view (per-node scale/shift tiled over T).
# --------------------------------------------------------------------------- #
def _bn_norm_kernel(x_ref, scale_ref, shift_ref, o_ref):
    o_ref[...] = x_ref[...] * scale_ref[...] + shift_ref[...]


def batchnorm_per_node(x, node_sum, node_ssq, *, eps=1e-5, row_tile=BN_ROW_TILE):
    """x: (B, C, T, N); node_sum/node_ssq: (1, N) per-node sums over (B, C, T)."""
    B, C, T, N = x.shape
    count = float(B * C * T)
    mean = node_sum / count                                   # tiny (1, N) XLA math
    var = jnp.maximum(node_ssq / count - mean * mean, 0.0)    # clamp: cancellation guard
    inv = jax.lax.rsqrt(var + eps)
    scale_t = jnp.tile(inv, (1, T))                           # (1, T*N): lane-dense
    shift_t = jnp.tile(-mean * inv, (1, T))

    m, tn = B * C, T * N
    xf = x.reshape(m, tn)
    tile, mp = _row_tiling(m, row_tile)
    out = pl.pallas_call(
        _bn_norm_kernel,
        out_shape=jax.ShapeDtypeStruct((mp, tn), jnp.float32),
        grid=(mp // tile,),
        in_specs=[pl.BlockSpec((tile, tn), lambda i: (i, 0)),
                  pl.BlockSpec((1, tn), lambda i: (0, 0)),
                  pl.BlockSpec((1, tn), lambda i: (0, 0))],
        out_specs=pl.BlockSpec((tile, tn), lambda i: (i, 0)),
        compiler_params=_cparams(("parallel",)),
    )(_pad_rows(xf, mp), scale_t, shift_t)
    out = out[:m] if mp != m else out
    return out.reshape(B, C, T, N)


# --------------------------------------------------------------------------- #
# STConvBlock forward
# --------------------------------------------------------------------------- #
def st_conv_block(X, graph_kernel, params, *, ks=5, kt=3):
    """X: (B, c_in, T, N) NCHW (matching PyTorch).  Returns (B, c_out, T, N)."""
    out = temporal_conv_layer(X, params["t1_w"], params["t1_b"], kt=kt)       # c_in < c_hid
    out = spatial_conv_layer(out, graph_kernel, params["theta"], ks=ks)       # identity res
    out, node_sum, node_ssq = temporal_conv_layer(
        out, params["t2_w"], params["t2_b"], params["t2r_w"], params["t2r_b"],
        kt=kt, emit_node_stats=True)                                          # c_hid > c_out
    # Reference permutes NCHW -> (B, N, T, C) for BatchNorm2d(n_nodes) and back; with
    # default affine (weight=1, bias=0) the per-node normalization is layout independent,
    # so it is computed directly on the NCHW tensor using the fused statistics.
    out = batchnorm_per_node(out, node_sum, node_ssq)
    # TODO(synk): Dropout2d(p=0.0) is identity; nonzero p would need pltpu PRNG.
    # TODO(synk): BatchNorm running_mean/var are not updated (forward output unaffected).
    return out


# --------------------------------------------------------------------------- #
# Driver
# --------------------------------------------------------------------------- #
if __name__ == "__main__":
    key = jax.random.PRNGKey(0)
    ks_, kt_ = 5, 3
    B, c_in, c_hid, c_out, T, N = 2, 4, 8, 4, 8, 16   # channels = (4, 8, 4), n_nodes = 16

    k = jax.random.split(key, 8)
    X = jax.random.normal(k[0], (B, c_in, T, N), jnp.float32)
    graph_kernel = jax.random.normal(k[1], (N, ks_ * N), jnp.float32) * 0.1

    std = 1.0 / math.sqrt(c_hid)
    params = {
        # TemporalConvLayer 1: conv1 = Conv2d(c_in, 2*c_hid, (kt,1), padding=(1,0))
        "t1_w": jax.random.normal(k[2], (2 * c_hid, c_in, kt_, 1), jnp.float32) * 0.1,
        "t1_b": jax.random.normal(k[3], (2 * c_hid,), jnp.float32) * 0.1,
        # SpatialConvLayer: theta (ks*c_hid, c_hid), uniform(-1/sqrt(c_out), 1/sqrt(c_out))
        "theta": jax.random.uniform(k[4], (ks_ * c_hid, c_hid), jnp.float32, -std, std),
        # TemporalConvLayer 2: conv1 = Conv2d(c_hid, 2*c_out, (kt,1), padding=(1,0))
        "t2_w": jax.random.normal(k[5], (2 * c_out, c_hid, kt_, 1), jnp.float32) * 0.1,
        "t2_b": jax.random.normal(k[6], (2 * c_out,), jnp.float32) * 0.1,
        # TemporalConvLayer 2 residual: conv_reshape = Conv2d(c_hid, c_out, (kt,1), padding=(1,0))
        "t2r_w": jax.random.normal(k[7], (c_out, c_hid, kt_, 1), jnp.float32) * 0.1,
        "t2r_b": jnp.zeros((c_out,), jnp.float32),
    }

    fwd = jax.jit(partial(st_conv_block, ks=ks_, kt=kt_))
    out = fwd(X, graph_kernel, params)
    out = jax.block_until_ready(out)
    assert out.shape == (B, c_out, T, N), out.shape
    assert bool(jnp.all(jnp.isfinite(out)))
    print("KERNEL_OK")
</pallas_src>

<mosaic_0001>
module attributes {stable_mosaic.version = 11 : i64} {
  func.func @_tconv_glu_kernel(%arg0: i32, %arg1: memref<1x4x128xf32, #tpu.memory_space<vmem>>, %arg2: memref<16x12xbf16, #tpu.memory_space<vmem>>, %arg3: memref<16x1xf32, #tpu.memory_space<vmem>>, %arg4: memref<1x8x128xf32, #tpu.memory_space<vmem>>) attributes {dimension_semantics = [#tpu.dimension_semantics<parallel>], iteration_bounds = array<i64: 2>, scalar_prefetch = 0 : i64, scratch_operands = 0 : i64, tpu.core_type = #tpu.core_type<tc>, window_params = [{transform_indices = @transform_0, window_bounds = array<i64: 1, 4, 128>}, {pipeline_mode = #tpu.pipeline_mode<synchronous>, transform_indices = @transform_1, window_bounds = array<i64: 16, 12>}, {pipeline_mode = #tpu.pipeline_mode<synchronous>, transform_indices = @transform_2, window_bounds = array<i64: 16, 1>}, {transform_indices = @transform_3, window_bounds = array<i64: 1, 8, 128>}]} {
    %c0 = arith.constant 0 : index
    %c0_0 = arith.constant 0 : index
    %c0_1 = arith.constant 0 : index
    %0 = vector.load %arg1[%c0, %c0_0, %c0_1] : memref<1x4x128xf32, #tpu.memory_space<vmem>>, vector<1x4x128xf32>
    %1 = vector.shape_cast %0 : vector<1x4x128xf32> to vector<4x128xf32>
    %cst = arith.constant 0.000000e+00 : f32
    %2 = vector.broadcast %cst : f32 to vector<4x16xf32>
    %3 = vector.extract_strided_slice %1 {offsets = [0, 0], sizes = [4, 112], strides = [1, 1]} : vector<4x128xf32> to vector<4x112xf32>
    %4 = tpu.concatenate %2, %3 in 1 : vector<4x16xf32>, vector<4x112xf32> -> vector<4x128xf32>
    %5 = vector.extract_strided_slice %1 {offsets = [0, 16], sizes = [4, 112], strides = [1, 1]} : vector<4x128xf32> to vector<4x112xf32>
    %6 = tpu.concatenate %5, %2 in 1 : vector<4x112xf32>, vector<4x16xf32> -> vector<4x128xf32>
    %7 = tpu.concatenate %4, %1, %6 in 0 : vector<4x128xf32>, vector<4x128xf32>, vector<4x128xf32> -> vector<12x128xf32>
    %8 = arith.truncf %7 : vector<12x128xf32> to vector<12x128xbf16>
    %c0_2 = arith.constant 0 : index
    %c0_3 = arith.constant 0 : index
    %9 = vector.load %arg2[%c0_2, %c0_3] : memref<16x12xbf16, #tpu.memory_space<vmem>>, vector<16x12xbf16>
    %cst_4 = arith.constant dense<0.000000e+00> : vector<16x128xf32>
    %10 = tpu.matmul %9, %8, %cst_4 {dimension_numbers = #tpu.dot_dimension_numbers<[1], [0], [0], [1], [0, 0, 1, 1], [], []>} : vector<16x12xbf16>, vector<12x128xbf16>, vector<16x128xf32> -> vector<16x128xf32>
    %c0_5 = arith.constant 0 : index
    %c0_6 = arith.constant 0 : index
    %11 = vector.load %arg3[%c0_5, %c0_6] : memref<16x1xf32, #tpu.memory_space<vmem>>, vector<16x1xf32>
    %12 = vector.broadcast %11 : vector<16x1xf32> to vector<16x128xf32>
    %13 = arith.addf %10, %12 : vector<16x128xf32>
    %14 = vector.extract_strided_slice %13 {offsets = [0, 0], sizes = [8, 128], strides = [1, 1]} : vector<16x128xf32> to vector<8x128xf32>
    %15 = vector.extract_strided_slice %13 {offsets = [8, 0], sizes = [8, 128], strides = [1, 1]} : vector<16x128xf32> to vector<8x128xf32>
    %cst_7 = arith.constant 0.000000e+00 : f32
    %16 = vector.broadcast %cst_7 : f32 to vector<8x128xf32>
    %17 = arith.subf %16, %15 : vector<8x128xf32>
    %18 = math.exp %17 : vector<8x128xf32>
    %cst_8 = arith.constant 1.000000e+00 : f32
    %19 = vector.broadcast %cst_8 : f32 to vector<8x128xf32>
    %20 = arith.addf %19, %18 : vector<8x128xf32>
    %cst_9 = arith.constant 1.000000e+00 : f32
    %21 = vector.broadcast %cst_9 : f32 to vector<8x128xf32>
    %22 = arith.divf %21, %20 : vector<8x128xf32>
    %23 = arith.mulf %14, %22 : vector<8x128xf32>
    %c0_10 = arith.constant 0 : index
    %c0_11 = arith.constant 0 : index
    %c0_12 = arith.constant 0 : index
    %24 = vector.load %arg4[%c0_10, %c0_11, %c0_12] : memref<1x8x128xf32, #tpu.memory_space<vmem>>, vector<1x8x128xf32>
    %25 = vector.shape_cast %24 : vector<1x8x128xf32> to vector<8x128xf32>
    %26 = vector.shape_cast %23 : vector<8x128xf32> to vector<1x8x128xf32>
    tpu.vector_store %arg4[%c0_10, %c0_11, %c0_12], %26 {strides = array<i32>} : memref<1x8x128xf32, #tpu.memory_space<vmem>>, vector<1x8x128xf32>,
    return
  }
  func.func @transform_0(%arg0: i32) -> (i32, i32, i32) {
    %c0_i32 = arith.constant 0 : i32
    %c0_i32_0 = arith.constant 0 : i32
    %c0_i32_1 = arith.constant 0 : i32
    return %arg0, %c0_i32, %c0_i32_0 : i32, i32, i32
  }
  func.func @transform_1(%arg0: i32) -> (i32, i32) {
    %c0_i32 = arith.constant 0 : i32
    %c0_i32_0 = arith.constant 0 : i32
    %c0_i32_1 = arith.constant 0 : i32
    return %c0_i32, %c0_i32_0 : i32, i32
  }
  func.func @transform_2(%arg0: i32) -> (i32, i32) {
    %c0_i32 = arith.constant 0 : i32
    %c0_i32_0 = arith.constant 0 : i32
    %c0_i32_1 = arith.constant 0 : i32
    return %c0_i32, %c0_i32_0 : i32, i32
  }
  func.func @transform_3(%arg0: i32) -> (i32, i32, i32) {
    %c0_i32 = arith.constant 0 : i32
    %c0_i32_0 = arith.constant 0 : i32
    %c0_i32_1 = arith.constant 0 : i32
    return %arg0, %c0_i32, %c0_i32_0 : i32, i32, i32
  }
}

module attributes {stable_mosaic.version = 11 : i64} {
  func.func @_matmul_kernel(%arg0: i32, %arg1: memref<128x16xf32, #tpu.memory_space<vmem>>, %arg2: memref<16x80xbf16, #tpu.memory_space<vmem>>, %arg3: memref<128x80xbf16, #tpu.memory_space<vmem>>) attributes {dimension_semantics = [#tpu.dimension_semantics<parallel>], iteration_bounds = array<i64: 1>, scalar_prefetch = 0 : i64, scratch_operands = 0 : i64, tpu.core_type = #tpu.core_type<tc>, window_params = [{transform_indices = @transform_0, window_bounds = array<i64: 128, 16>}, {pipeline_mode = #tpu.pipeline_mode<synchronous>, transform_indices = @transform_1, window_bounds = array<i64: 16, 80>}, {transform_indices = @transform_2, window_bounds = array<i64: 128, 80>}]} {
    %c0 = arith.constant 0 : index
    %c0_0 = arith.constant 0 : index
    %0 = vector.load %arg1[%c0, %c0_0] : memref<128x16xf32, #tpu.memory_space<vmem>>, vector<128x16xf32>
    %1 = arith.truncf %0 : vector<128x16xf32> to vector<128x16xbf16>
    %c0_1 = arith.constant 0 : index
    %c0_2 = arith.constant 0 : index
    %2 = vector.load %arg2[%c0_1, %c0_2] : memref<16x80xbf16, #tpu.memory_space<vmem>>, vector<16x80xbf16>
    %cst = arith.constant dense<0.000000e+00> : vector<128x80xf32>
    %3 = tpu.matmul %1, %2, %cst {dimension_numbers = #tpu.dot_dimension_numbers<[1], [0], [0], [1], [0, 0, 1, 1], [], []>} : vector<128x16xbf16>, vector<16x80xbf16>, vector<128x80xf32> -> vector<128x80xf32>
    %4 = arith.truncf %3 : vector<128x80xf32> to vector<128x80xbf16>
    %c0_3 = arith.constant 0 : index
    %c0_4 = arith.constant 0 : index
    %5 = vector.load %arg3[%c0_3, %c0_4] : memref<128x80xbf16, #tpu.memory_space<vmem>>, vector<128x80xbf16>
    tpu.vector_store %arg3[%c0_3, %c0_4], %4 {strides = array<i32>} : memref<128x80xbf16, #tpu.memory_space<vmem>>, vector<128x80xbf16>,
    return
  }
  func.func @transform_0(%arg0: i32) -> (i32, i32) {
    %c0_i32 = arith.constant 0 : i32
    %c0_i32_0 = arith.constant 0 : i32
    return %arg0, %c0_i32 : i32, i32
  }
  func.func @transform_1(%arg0: i32) -> (i32, i32) {
    %c0_i32 = arith.constant 0 : i32
    %c0_i32_0 = arith.constant 0 : i32
    %c0_i32_1 = arith.constant 0 : i32
    return %c0_i32, %c0_i32_0 : i32, i32
  }
  func.func @transform_2(%arg0: i32) -> (i32, i32) {
    %c0_i32 = arith.constant 0 : i32
    %c0_i32_0 = arith.constant 0 : i32
    return %arg0, %c0_i32 : i32, i32
  }
}

module attributes {stable_mosaic.version = 11 : i64} {
  func.func @_matmul_res_relu_kernel(%arg0: i32, %arg1: memref<256x40xbf16, #tpu.memory_space<vmem>>, %arg2: memref<40x8xbf16, #tpu.memory_space<vmem>>, %arg3: memref<256x8xf32, #tpu.memory_space<vmem>>, %arg4: memref<256x8xf32, #tpu.memory_space<vmem>>) attributes {dimension_semantics = [#tpu.dimension_semantics<parallel>], iteration_bounds = array<i64: 1>, scalar_prefetch = 0 : i64, scratch_operands = 0 : i64, tpu.core_type = #tpu.core_type<tc>, window_params = [{transform_indices = @transform_0, window_bounds = array<i64: 256, 40>}, {pipeline_mode = #tpu.pipeline_mode<synchronous>, transform_indices = @transform_1, window_bounds = array<i64: 40, 8>}, {transform_indices = @transform_2, window_bounds = array<i64: 256, 8>}, {transform_indices = @transform_3, window_bounds = array<i64: 256, 8>}]} {
    %c0 = arith.constant 0 : index
    %c0_0 = arith.constant 0 : index
    %0 = vector.load %arg1[%c0, %c0_0] : memref<256x40xbf16, #tpu.memory_space<vmem>>, vector<256x40xbf16>
    %c0_1 = arith.constant 0 : index
    %c0_2 = arith.constant 0 : index
    %1 = vector.load %arg2[%c0_1, %c0_2] : memref<40x8xbf16, #tpu.memory_space<vmem>>, vector<40x8xbf16>
    %cst = arith.constant dense<0.000000e+00> : vector<256x8xf32>
    %2 = tpu.matmul %0, %1, %cst {dimension_numbers = #tpu.dot_dimension_numbers<[1], [0], [0], [1], [0, 0, 1, 1], [], []>} : vector<256x40xbf16>, vector<40x8xbf16>, vector<256x8xf32> -> vector<256x8xf32>
    %c0_3 = arith.constant 0 : index
    %c0_4 = arith.constant 0 : index
    %3 = vector.load %arg3[%c0_3, %c0_4] : memref<256x8xf32, #tpu.memory_space<vmem>>, vector<256x8xf32>
    %4 = arith.addf %2, %3 : vector<256x8xf32>
    %cst_5 = arith.constant 0.000000e+00 : f32
    %5 = vector.broadcast %cst_5 : f32 to vector<256x8xf32>
    %6 = arith.maximumf %4, %5 : vector<256x8xf32>
    %c0_6 = arith.constant 0 : index
    %c0_7 = arith.constant 0 : index
    %7 = vector.load %arg4[%c0_6, %c0_7] : memref<256x8xf32, #tpu.memory_space<vmem>>, vector<256x8xf32>
    tpu.vector_store %arg4[%c0_6, %c0_7], %6 {strides = array<i32>} : memref<256x8xf32, #tpu.memory_space<vmem>>, vector<256x8xf32>,
    return
  }
  func.func @transform_0(%arg0: i32) -> (i32, i32) {
    %c0_i32 = arith.constant 0 : i32
    %c0_i32_0 = arith.constant 0 : i32
    return %arg0, %c0_i32 : i32, i32
  }
  func.func @transform_1(%arg0: i32) -> (i32, i32) {
    %c0_i32 = arith.constant 0 : i32
    %c0_i32_0 = arith.constant 0 : i32
    %c0_i32_1 = arith.constant 0 : i32
    return %c0_i32, %c0_i32_0 : i32, i32
  }
  func.func @transform_2(%arg0: i32) -> (i32, i32) {
    %c0_i32 = arith.constant 0 : i32
    %c0_i32_0 = arith.constant 0 : i32
    return %arg0, %c0_i32 : i32, i32
  }
  func.func @transform_3(%arg0: i32) -> (i32, i32) {
    %c0_i32 = arith.constant 0 : i32
    %c0_i32_0 = arith.constant 0 : i32
    return %arg0, %c0_i32 : i32, i32
  }
}

module attributes {stable_mosaic.version = 11 : i64} {
  func.func @_tconv_glu_kernel(%arg0: i32, %arg1: memref<1x8x128xf32, #tpu.memory_space<vmem>>, %arg2: memref<8x24xbf16, #tpu.memory_space<vmem>>, %arg3: memref<8x1xf32, #tpu.memory_space<vmem>>, %arg4: memref<1x4x128xf32, #tpu.memory_space<vmem>>, %arg5: memref<1x1x16xf32, #tpu.memory_space<vmem>>, %arg6: memref<1x1x16xf32, #tpu.memory_space<vmem>>) attributes {dimension_semantics = [#tpu.dimension_semantics<parallel>], iteration_bounds = array<i64: 2>, scalar_prefetch = 0 : i64, scratch_operands = 0 : i64, tpu.core_type = #tpu.core_type<tc>, window_params = [{transform_indices = @transform_0, window_bounds = array<i64: 1, 8, 128>}, {pipeline_mode = #tpu.pipeline_mode<synchronous>, transform_indices = @transform_1, window_bounds = array<i64: 8, 24>}, {pipeline_mode = #tpu.pipeline_mode<synchronous>, transform_indices = @transform_2, window_bounds = array<i64: 8, 1>}, {transform_indices = @transform_3, window_bounds = array<i64: 1, 4, 128>}, {transform_indices = @transform_4, window_bounds = array<i64: 1, 1, 16>}, {transform_indices = @transform_5, window_bounds = array<i64: 1, 1, 16>}]} {
    %c0 = arith.constant 0 : index
    %c0_0 = arith.constant 0 : index
    %c0_1 = arith.constant 0 : index
    %0 = vector.load %arg1[%c0, %c0_0, %c0_1] : memref<1x8x128xf32, #tpu.memory_space<vmem>>, vector<1x8x128xf32>
    %1 = vector.shape_cast %0 : vector<1x8x128xf32> to vector<8x128xf32>
    %cst = arith.constant 0.000000e+00 : f32
    %2 = vector.broadcast %cst : f32 to vector<8x16xf32>
    %3 = vector.extract_strided_slice %1 {offsets = [0, 0], sizes = [8, 112], strides = [1, 1]} : vector<8x128xf32> to vector<8x112xf32>
    %4 = tpu.concatenate %2, %3 in 1 : vector<8x16xf32>, vector<8x112xf32> -> vector<8x128xf32>
    %5 = vector.extract_strided_slice %1 {offsets = [0, 16], sizes = [8, 112], strides = [1, 1]} : vector<8x128xf32> to vector<8x112xf32>
    %6 = tpu.concatenate %5, %2 in 1 : vector<8x112xf32>, vector<8x16xf32> -> vector<8x128xf32>
    %7 = tpu.concatenate %4, %1, %6 in 0 : vector<8x128xf32>, vector<8x128xf32>, vector<8x128xf32> -> vector<24x128xf32>
    %8 = arith.truncf %7 : vector<24x128xf32> to vector<24x128xbf16>
    %c0_2 = arith.constant 0 : index
    %c0_3 = arith.constant 0 : index
    %9 = vector.load %arg2[%c0_2, %c0_3] : memref<8x24xbf16, #tpu.memory_space<vmem>>, vector<8x24xbf16>
    %cst_4 = arith.constant dense<0.000000e+00> : vector<8x128xf32>
    %10 = tpu.matmul %9, %8, %cst_4 {dimension_numbers = #tpu.dot_dimension_numbers<[1], [0], [0], [1], [0, 0, 1, 1], [], []>} : vector<8x24xbf16>, vector<24x128xbf16>, vector<8x128xf32> -> vector<8x128xf32>
    %c0_5 = arith.constant 0 : index
    %c0_6 = arith.constant 0 : index
    %11 = vector.load %arg3[%c0_5, %c0_6] : memref<8x1xf32, #tpu.memory_space<vmem>>, vector<8x1xf32>
    %12 = vector.broadcast %11 : vector<8x1xf32> to vector<8x128xf32>
    %13 = arith.addf %10, %12 : vector<8x128xf32>
    %14 = vector.extract_strided_slice %13 {offsets = [0, 0], sizes = [4, 128], strides = [1, 1]} : vector<8x128xf32> to vector<4x128xf32>
    %15 = vector.extract_strided_slice %13 {offsets = [4, 0], sizes = [4, 128], strides = [1, 1]} : vector<8x128xf32> to vector<4x128xf32>
    %cst_7 = arith.constant 0.000000e+00 : f32
    %16 = vector.broadcast %cst_7 : f32 to vector<4x128xf32>
    %17 = arith.subf %16, %15 : vector<4x128xf32>
    %18 = math.exp %17 : vector<4x128xf32>
    %cst_8 = arith.constant 1.000000e+00 : f32
    %19 = vector.broadcast %cst_8 : f32 to vector<4x128xf32>
    %20 = arith.addf %19, %18 : vector<4x128xf32>
    %cst_9 = arith.constant 1.000000e+00 : f32
    %21 = vector.broadcast %cst_9 : f32 to vector<4x128xf32>
    %22 = arith.divf %21, %20 : vector<4x128xf32>
    %23 = arith.mulf %14, %22 : vector<4x128xf32>
    %c0_10 = arith.constant 0 : index
    %c0_11 = arith.constant 0 : index
    %c0_12 = arith.constant 0 : index
    %24 = vector.load %arg4[%c0_10, %c0_11, %c0_12] : memref<1x4x128xf32, #tpu.memory_space<vmem>>, vector<1x4x128xf32>
    %25 = vector.shape_cast %24 : vector<1x4x128xf32> to vector<4x128xf32>
    %26 = vector.shape_cast %23 : vector<4x128xf32> to vector<1x4x128xf32>
    tpu.vector_store %arg4[%c0_10, %c0_11, %c0_12], %26 {strides = array<i32>} : memref<1x4x128xf32, #tpu.memory_space<vmem>>, vector<1x4x128xf32>,
    %cst_13 = arith.constant dense<0.000000e+00> : vector<128xf32>
    %27 = vector.multi_reduction <add>, %23, %cst_13 [0] : vector<4x128xf32> to vector<128xf32>
    %28 = vector.shape_cast %27 : vector<128xf32> to vector<1x128xf32>
    %29 = arith.mulf %23, %23 : vector<4x128xf32>
    %cst_14 = arith.constant dense<0.000000e+00> : vector<128xf32>
    %30 = vector.multi_reduction <add>, %29, %cst_14 [0] : vector<4x128xf32> to vector<128xf32>
    %31 = vector.shape_cast %30 : vector<128xf32> to vector<1x128xf32>
    %cst_15 = arith.constant 0.000000e+00 : f32
    %32 = vector.broadcast %cst_15 : f32 to vector<1x16xf32>
    %cst_16 = arith.constant 0.000000e+00 : f32
    %33 = vector.broadcast %cst_16 : f32 to vector<1x16xf32>
    %34 = vector.extract_strided_slice %28 {offsets = [0, 0], sizes = [1, 16], strides = [1, 1]} : vector<1x128xf32> to vector<1x16xf32>
    %35 = arith.addf %32, %34 : vector<1x16xf32>
    %36 = vector.extract_strided_slice %31 {offsets = [0, 0], sizes = [1, 16], strides = [1, 1]} : vector<1x128xf32> to vector<1x16xf32>
    %37 = arith.addf %33, %36 : vector<1x16xf32>
    %38 = vector.extract_strided_slice %28 {offsets = [0, 16], sizes = [1, 16], strides = [1, 1]} : vector<1x128xf32> to vector<1x16xf32>
    %39 = arith.addf %35, %38 : vector<1x16xf32>
    %40 = vector.extract_strided_slice %31 {offsets = [0, 16], sizes = [1, 16], strides = [1, 1]} : vector<1x128xf32> to vector<1x16xf32>
    %41 = arith.addf %37, %40 : vector<1x16xf32>
    %42 = vector.extract_strided_slice %28 {offsets = [0, 32], sizes = [1, 16], strides = [1, 1]} : vector<1x128xf32> to vector<1x16xf32>
    %43 = arith.addf %39, %42 : vector<1x16xf32>
    %44 = vector.extract_strided_slice %31 {offsets = [0, 32], sizes = [1, 16], strides = [1, 1]} : vector<1x128xf32> to vector<1x16xf32>
    %45 = arith.addf %41, %44 : vector<1x16xf32>
    %46 = vector.extract_strided_slice %28 {offsets = [0, 48], sizes = [1, 16], strides = [1, 1]} : vector<1x128xf32> to vector<1x16xf32>
    %47 = arith.addf %43, %46 : vector<1x16xf32>
    %48 = vector.extract_strided_slice %31 {offsets = [0, 48], sizes = [1, 16], strides = [1, 1]} : vector<1x128xf32> to vector<1x16xf32>
    %49 = arith.addf %45, %48 : vector<1x16xf32>
    %50 = vector.extract_strided_slice %28 {offsets = [0, 64], sizes = [1, 16], strides = [1, 1]} : vector<1x128xf32> to vector<1x16xf32>
    %51 = arith.addf %47, %50 : vector<1x16xf32>
    %52 = vector.extract_strided_slice %31 {offsets = [0, 64], sizes = [1, 16], strides = [1, 1]} : vector<1x128xf32> to vector<1x16xf32>
    %53 = arith.addf %49, %52 : vector<1x16xf32>
    %54 = vector.extract_strided_slice %28 {offsets = [0, 80], sizes = [1, 16], strides = [1, 1]} : vector<1x128xf32> to vector<1x16xf32>
    %55 = arith.addf %51, %54 : vector<1x16xf32>
    %56 = vector.extract_strided_slice %31 {offsets = [0, 80], sizes = [1, 16], strides = [1, 1]} : vector<1x128xf32> to vector<1x16xf32>
    %57 = arith.addf %53, %56 : vector<1x16xf32>
    %58 = vector.extract_strided_slice %28 {offsets = [0, 96], sizes = [1, 16], strides = [1, 1]} : vector<1x128xf32> to vector<1x16xf32>
    %59 = arith.addf %55, %58 : vector<1x16xf32>
    %60 = vector.extract_strided_slice %31 {offsets = [0, 96], sizes = [1, 16], strides = [1, 1]} : vector<1x128xf32> to vector<1x16xf32>
    %61 = arith.addf %57, %60 : vector<1x16xf32>
    %62 = vector.extract_strided_slice %28 {offsets = [0, 112], sizes = [1, 16], strides = [1, 1]} : vector<1x128xf32> to vector<1x16xf32>
    %63 = arith.addf %59, %62 : vector<1x16xf32>
    %64 = vector.extract_strided_slice %31 {offsets = [0, 112], sizes = [1, 16], strides = [1, 1]} : vector<1x128xf32> to vector<1x16xf32>
    %65 = arith.addf %61, %64 : vector<1x16xf32>
    %c0_17 = arith.constant 0 : index
    %c0_18 = arith.constant 0 : index
    %c0_19 = arith.constant 0 : index
    %66 = vector.load %arg5[%c0_17, %c0_18, %c0_19] : memref<1x1x16xf32, #tpu.memory_space<vmem>>, vector<1x1x16xf32>
    %67 = vector.shape_cast %66 : vector<1x1x16xf32> to vector<1x16xf32>
    %68 = vector.shape_cast %63 : vector<1x16xf32> to vector<1x1x16xf32>
    tpu.vector_store %arg5[%c0_17, %c0_18, %c0_19], %68 {strides = array<i32>} : memref<1x1x16xf32, #tpu.memory_space<vmem>>, vector<1x1x16xf32>,
    %c0_20 = arith.constant 0 : index
    %c0_21 = arith.constant 0 : index
    %c0_22 = arith.constant 0 : index
    %69 = vector.load %arg6[%c0_20, %c0_21, %c0_22] : memref<1x1x16xf32, #tpu.memory_space<vmem>>, vector<1x1x16xf32>
    %70 = vector.shape_cast %69 : vector<1x1x16xf32> to vector<1x16xf32>
    %71 = vector.shape_cast %65 : vector<1x16xf32> to vector<1x1x16xf32>
    tpu.vector_store %arg6[%c0_20, %c0_21, %c0_22], %71 {strides = array<i32>} : memref<1x1x16xf32, #tpu.memory_space<vmem>>, vector<1x1x16xf32>,
    return
  }
  func.func @transform_0(%arg0: i32) -> (i32, i32, i32) {
    %c0_i32 = arith.constant 0 : i32
    %c0_i32_0 = arith.constant 0 : i32
    %c0_i32_1 = arith.constant 0 : i32
    return %arg0, %c0_i32, %c0_i32_0 : i32, i32, i32
  }
  func.func @transform_1(%arg0: i32) -> (i32, i32) {
    %c0_i32 = arith.constant 0 : i32
    %c0_i32_0 = arith.constant 0 : i32
    %c0_i32_1 = arith.constant 0 : i32
    return %c0_i32, %c0_i32_0 : i32, i32
  }
  func.func @transform_2(%arg0: i32) -> (i32, i32) {
    %c0_i32 = arith.constant 0 : i32
    %c0_i32_0 = arith.constant 0 : i32
    %c0_i32_1 = arith.constant 0 : i32
    return %c0_i32, %c0_i32_0 : i32, i32
  }
  func.func @transform_3(%arg0: i32) -> (i32, i32, i32) {
    %c0_i32 = arith.constant 0 : i32
    %c0_i32_0 = arith.constant 0 : i32
    %c0_i32_1 = arith.constant 0 : i32
    return %arg0, %c0_i32, %c0_i32_0 : i32, i32, i32
  }
  func.func @transform_4(%arg0: i32) -> (i32, i32, i32) {
    %c0_i32 = arith.constant 0 : i32
    %c0_i32_0 = arith.constant 0 : i32
    %c0_i32_1 = arith.constant 0 : i32
    return %arg0, %c0_i32, %c0_i32_0 : i32, i32, i32
  }
  func.func @transform_5(%arg0: i32) -> (i32, i32, i32) {
    %c0_i32 = arith.constant 0 : i32
    %c0_i32_0 = arith.constant 0 : i32
    %c0_i32_1 = arith.constant 0 : i32
    return %arg0, %c0_i32, %c0_i32_0 : i32, i32, i32
  }
}

module attributes {stable_mosaic.version = 11 : i64} {
  func.func @_bn_norm_kernel(%arg0: i32, %arg1: memref<8x128xf32, #tpu.memory_space<vmem>>, %arg2: memref<1x128xf32, #tpu.memory_space<vmem>>, %arg3: memref<1x128xf32, #tpu.memory_space<vmem>>, %arg4: memref<8x128xf32, #tpu.memory_space<vmem>>) attributes {dimension_semantics = [#tpu.dimension_semantics<parallel>], iteration_bounds = array<i64: 1>, scalar_prefetch = 0 : i64, scratch_operands = 0 : i64, tpu.core_type = #tpu.core_type<tc>, window_params = [{transform_indices = @transform_0, window_bounds = array<i64: 8, 128>}, {pipeline_mode = #tpu.pipeline_mode<synchronous>, transform_indices = @transform_1, window_bounds = array<i64: 1, 128>}, {pipeline_mode = #tpu.pipeline_mode<synchronous>, transform_indices = @transform_2, window_bounds = array<i64: 1, 128>}, {transform_indices = @transform_3, window_bounds = array<i64: 8, 128>}]} {
    %c0 = arith.constant 0 : index
    %c0_0 = arith.constant 0 : index
    %0 = vector.load %arg1[%c0, %c0_0] : memref<8x128xf32, #tpu.memory_space<vmem>>, vector<8x128xf32>
    %c0_1 = arith.constant 0 : index
    %c0_2 = arith.constant 0 : index
    %1 = vector.load %arg2[%c0_1, %c0_2] : memref<1x128xf32, #tpu.memory_space<vmem>>, vector<1x128xf32>
    %2 = vector.broadcast %1 : vector<1x128xf32> to vector<8x128xf32>
    %3 = arith.mulf %0, %2 : vector<8x128xf32>
    %c0_3 = arith.constant 0 : index
    %c0_4 = arith.constant 0 : index
    %4 = vector.load %arg3[%c0_3, %c0_4] : memref<1x128xf32, #tpu.memory_space<vmem>>, vector<1x128xf32>
    %5 = vector.broadcast %4 : vector<1x128xf32> to vector<8x128xf32>
    %6 = arith.addf %3, %5 : vector<8x128xf32>
    %c0_5 = arith.constant 0 : index
    %c0_6 = arith.constant 0 : index
    %7 = vector.load %arg4[%c0_5, %c0_6] : memref<8x128xf32, #tpu.memory_space<vmem>>, vector<8x128xf32>
    tpu.vector_store %arg4[%c0_5, %c0_6], %6 {strides = array<i32>} : memref<8x128xf32, #tpu.memory_space<vmem>>, vector<8x128xf32>,
    return
  }
  func.func @transform_0(%arg0: i32) -> (i32, i32) {
    %c0_i32 = arith.constant 0 : i32
    %c0_i32_0 = arith.constant 0 : i32
    return %arg0, %c0_i32 : i32, i32
  }
  func.func @transform_1(%arg0: i32) -> (i32, i32) {
    %c0_i32 = arith.constant 0 : i32
    %c0_i32_0 = arith.constant 0 : i32
    %c0_i32_1 = arith.constant 0 : i32
    return %c0_i32, %c0_i32_0 : i32, i32
  }
  func.func @transform_2(%arg0: i32) -> (i32, i32) {
    %c0_i32 = arith.constant 0 : i32
    %c0_i32_0 = arith.constant 0 : i32
    %c0_i32_1 = arith.constant 0 : i32
    return %c0_i32, %c0_i32_0 : i32, i32
  }
  func.func @transform_3(%arg0: i32) -> (i32, i32) {
    %c0_i32 = arith.constant 0 : i32
    %c0_i32_0 = arith.constant 0 : i32
    return %arg0, %c0_i32 : i32, i32
  }
}

</mosaic_0001>

<llo_original>
// kernel: st_conv_block.5
$region0: #{st_conv_block.5}
  #allocation0 [shape = 'u32[]', space=smem, size = 0x4, offset = 0x4, fixed_abs, tag = 'smem constant byte address 0x4 - core index']
  #allocation1 [shape = 'u32[72,128]{1,0:T(1,128)}', space=vmem, size = 0x9000, scoped, tag = 'internal scratch']
  %s0 = inlined_call_operand.vmem [shape: f32[2,4,128], index: 0, kind: input, shape index: {}]
  %s1 = inlined_call_operand.vmem [shape: bf16[16,12], index: 1, kind: input, shape index: {}]
  %s2 = inlined_call_operand.vmem [shape: f32[16,1], index: 2, kind: input, shape index: {}]
  %s3 = inlined_call_operand.vmem [shape: f32[2,8,128], index: 3, kind: output, shape index: {}]
  %s4 = sld [smem:[#allocation0]]
  $region45: #{st_conv_block.5} parent=0
    _
  %s6 = ssub.s32 1, %s4
  %s7 = scalar_select 0, %s6, %s4
  loop: start=0, step=1, limit=4
  $region2: #{st_conv_block.5} parent=0 // loop_pre_header
    _
  $region3: #{st_conv_block.5} parent=0 // loop_header
    %s9 = sphi 0, %s13
    %p10 = scmp.ge.s32.totalorder %s9, 4
    %s19 = sphi 0, %s21
    %s22 = sphi 0, %s19
    %s23 = sphi 0, %s22
    %s39 = sphi 0, %s23
    %s43 = sphi 0, %s43
    %s45 = sphi 0, %s43
    %s46 = sphi 0, %s45
    %s60 = sphi 0, %s46
    %s64 = sphi 0, %s64
    %s66 = sphi 0, %s64
    %s67 = sphi 0, %s66
    %s81 = sphi 0, %s67
    %s87 = sphi 0, %s89
    %s90 = sphi 0, %s87
    %s91 = sphi 0, %s90
    %s107 = sphi 0, %s91
  $region4: #{st_conv_block.5} parent=0 // loop_header_branch
    %12 = sbr.rel (%p10) target = $region8
  $region5: #{st_conv_block.5} parent=0 // loop_body
    %s14 = ssub.s32 %s9, 1
    %s15 = ssub.s32 %s9, 2
    %s16 = sadd.s32 %s9, 1
    %s17 = ssub.s32 %s9, %s16
    %p18 = scmp.eq.s32.totalorder %s17, 0
    %s20 = sadd.s32 %s19, 1
    %s21 = scalar_select %p18, %s19, %s20
    %p24 = pneg %p18
    %p25 = scmp.eq.s32.totalorder %s9, 1
    %p26 = por %p24, %p25
    %p27 = scmp.ne.s32.totalorder %s19, %s22
    %p28 = scmp.eq.s32.totalorder %s9, 0
    %p29 = por %p27, %p28
    %p30 = scmp.ne.s32.totalorder %s19, %s22
    %p31 = scmp.eq.s32.totalorder %s14, 1
    %p32 = por %p30, %p31
    %p33 = scmp.ne.s32.totalorder %s22, %s23
    %p34 = scmp.eq.s32.totalorder %s14, 0
    %p35 = por %p33, %p34
    %p36 = scmp.ne.s32.totalorder %s22, %s23
    %p37 = scmp.eq.s32.totalorder %s15, 1
    %p38 = por %p36, %p37
    %p40 = scmp.ne.s32.totalorder %s23, %s39
    %p41 = scmp.eq.s32.totalorder %s15, 0
    %p42 = por %p40, %p41
    %s44 = sadd.s32 %s43, 1
    %p47 = scmp.eq.s32.totalorder %s9, 1
    %p48 = scmp.ne.s32.totalorder %s43, %s45
    %p49 = scmp.eq.s32.totalorder %s9, 0
    %p50 = por %p48, %p49
    %p51 = scmp.ne.s32.totalorder %s43, %s45
    %p52 = scmp.eq.s32.totalorder %s14, 1
    %p53 = por %p51, %p52
    %p54 = scmp.ne.s32.totalorder %s45, %s46
    %p55 = scmp.eq.s32.totalorder %s14, 0
    %p56 = por %p54, %p55
    %p57 = scmp.ne.s32.totalorder %s45, %s46
    %p58 = scmp.eq.s32.totalorder %s15, 1
    %p59 = por %p57, %p58
    %p61 = scmp.ne.s32.totalorder %s46, %s60
    %p62 = scmp.eq.s32.totalorder %s15, 0
    %p63 = por %p61, %p62
    %s65 = sadd.s32 %s64, 1
    %p68 = scmp.eq.s32.totalorder %s9, 1
    %p69 = scmp.ne.s32.totalorder %s64, %s66
    %p70 = scmp.eq.s32.totalorder %s9, 0
    %p71 = por %p69, %p70
    %p72 = scmp.ne.s32.totalorder %s64, %s66
    %p73 = scmp.eq.s32.totalorder %s14, 1
    %p74 = por %p72, %p73
    %p75 = scmp.ne.s32.totalorder %s66, %s67
    %p76 = scmp.eq.s32.totalorder %s14, 0
    %p77 = por %p75, %p76
    %p78 = scmp.ne.s32.totalorder %s66, %s67
    %p79 = scmp.eq.s32.totalorder %s15, 1
    %p80 = por %p78, %p79
    %p82 = scmp.ne.s32.totalorder %s67, %s81
    %p83 = scmp.eq.s32.totalorder %s15, 0
    %p84 = por %p82, %p83
    %s85 = ssub.s32 %s9, %s16
    %p86 = scmp.eq.s32.totalorder %s85, 0
    %s88 = sadd.s32 %s87, 1
    %s89 = scalar_select %p86, %s87, %s88
    %p92 = pneg %p86
    %p93 = scmp.eq.s32.totalorder %s9, 1
    %p94 = por %p92, %p93
    %p95 = scmp.ne.s32.totalorder %s87, %s90
    %p96 = scmp.eq.s32.totalorder %s9, 0
    %p97 = por %p95, %p96
    %p98 = scmp.ne.s32.totalorder %s87, %s90
    %p99 = scmp.eq.s32.totalorder %s14, 1
    %p100 = por %p98, %p99
    %p101 = scmp.ne.s32.totalorder %s90, %s91
    %p102 = scmp.eq.s32.totalorder %s14, 0
    %p103 = por %p101, %p102
    %p104 = scmp.ne.s32.totalorder %s90, %s91
    %p105 = scmp.eq.s32.totalorder %s15, 1
    %p106 = por %p104, %p105
    %p108 = scmp.ne.s32.totalorder %s91, %s107
    %p109 = scmp.eq.s32.totalorder %s15, 0
    %p110 = por %p108, %p109
    %p111 = scmp.le.s32.totalorder 1, %s9
    %p112 = scmp.lt.s32.totalorder %s9, 3
    %p113 = pnand %p111, %p112
    %p114 = pneg %p113
    // Predicated region
    $region9: #{st_conv_block.5} parent=5 // pred_check
      _
    $region10: #{st_conv_block.5} parent=5 // pred_check_branch
      %116 = sbr.rel (%p113) target = $region12
    $region11: #{st_conv_block.5} parent=5 // pred_region
      %s117 = ssub.s32 %s9, 1
      // Predicated region
      $region13: #{st_conv_block.5} parent=11 // pred_check
        %p118 = pneg %p56
      $region14: #{st_conv_block.5} parent=11 // pred_check_branch
        %120 = sbr.rel (%p118) target = $region16
      $region15: #{st_conv_block.5} parent=11 // pred_region
        _
      $region16: #{st_conv_block.5} parent=11 // pred_fallthru
        _
      // Predicated region
      $region17: #{st_conv_block.5} parent=11 // pred_check
        %p121 = pneg %p77
      $region18: #{st_conv_block.5} parent=11 // pred_check_branch
        %123 = sbr.rel (%p121) target = $region20
      $region19: #{st_conv_block.5} parent=11 // pred_region
        _
      $region20: #{st_conv_block.5} parent=11 // pred_fallthru
        _
    $region12: #{st_conv_block.5} parent=5 // pred_fallthru
      _
    %p124 = scmp.lt.s32.totalorder %s9, 2
    // Predicated region
    $region21: #{st_conv_block.5} parent=5 // pred_check
      %p125 = pneg %p124
    $region22: #{st_conv_block.5} parent=5 // pred_check_branch
      %127 = sbr.rel (%p125) target = $region24
    $region23: #{st_conv_block.5} parent=5 // pred_region
      // Predicated region
      $region25: #{st_conv_block.5} parent=23 // pred_check
        %p128 = pneg %p29
      $region26: #{st_conv_block.5} parent=23 // pred_check_branch
        %130 = sbr.rel (%p128) target = $region28
      $region27: #{st_conv_block.5} parent=23 // pred_region
        %p131 = scmp.lt.s32.totalorder %s9, 1
        %s132 = scalar_select %p131, %s9, 1
        %s133 = smul.addr %s132, 4
        %s134 = scalar_lea.vmem %s0, %s133
      $region28: #{st_conv_block.5} parent=23 // pred_fallthru
        _
    $region24: #{st_conv_block.5} parent=5 // pred_fallthru
      _
    %p135 = scmp.le.s32.totalorder 1, %s9
    %p136 = scmp.lt.s32.totalorder %s9, 3
    %p137 = pnand %p135, %p136
    %p138 = pneg %p137
    // Predicated region
    $region29: #{st_conv_block.5} parent=5 // pred_check
      _
    $region30: #{st_conv_block.5} parent=5 // pred_check_branch
      %140 = sbr.rel (%p137) target = $region32
    $region31: #{st_conv_block.5} parent=5 // pred_region
      %s141 = ssub.s32 %s9, 1
      %p142 = scmp.lt.s32.totalorder %s14, 1
      %s143 = scalar_select %p142, %s14, 1
      %s144 = smul.addr %s143, 4
      %s145 = scalar_lea.vmem %s0, %s144
      %p146 = pneg %p35
      %p147 = pneg %p32
      %p148 = pneg %p56
      %p149 = pneg %p53
      %p150 = pneg %p77
      %p151 = pneg %p74
      %p152 = pneg %p103
      %p153 = pneg %p100
      %p154 = scmp.lt.s32.totalorder %s14, 1
      %s155 = scalar_select %p154, %s14, 1
      %s156 = smul.addr %s155, 8
      %s157 = scalar_lea.vmem %s3, %s156
      %p158 = scmp.lt.s32.totalorder %s14, 1
      %s159 = scalar_select %p158, %s14, 1
      %s160 = smul.addr %s159, 4
      %s161 = scalar_lea.vmem %s0, %s160
      %p162 = scmp.lt.s32.totalorder %s14, 1
      %s163 = scalar_select %p162, %s14, 1
      %s164 = smul.addr %s163, 8
      %s165 = scalar_lea.vmem %s3, %s164
      %v167 = vld [vmem:[%s161] sm:$0xf]
      %169 = vrot.lane.b32.xlu0 %v167, 16
      %v170 = vpop.permute.xlu0 %169
      %vm172 = vcmask 130048
      %v173 = vsel %vm172, 0.0, %v170
      %174 = vrot.lane.b32.xlu0 %v167, 112
      %v175 = vpop.permute.xlu0 %174
      %vm177 = vcmask 916480
      %v178 = vsel %vm177, %v175, 0.0
      %v179 = vrot.slane %v167, 4
      %vm181 = vcmask 1043456
      %v182 = vsel %vm181, %v173, %v179
      %v183 = vpack.c.bf16 %v178, %v182
      %v184 = vld [vmem:[%s1] sm:$0xf]
      %v185 = vld [vmem:[%s1 + $0x4] sm:$0xf]
      %v186 = vld [vmem:[%s2] sm:$0xff]
      %v187 = vld [vmem:[%s2 + $0x8] sm:$0xff]
      %189 = vset.pattern.permute.xlu0 0
      %190 = vperm.xlu0 %189, %v186
      %v191 = vpop.permute.xlu0 %190
      %194 = vset.pattern.permute.xlu0 0
      %195 = vperm.xlu0 %194, %v187
      %v196 = vpop.permute.xlu0 %195
      %v200 = vunpack.c.l.b16 %v184
      %v201 = vunpack.c.l.b16 %v185
      %v202 = vpack.c.b16 %v201, %v200
      %vm203 = vcmask 97280
      %v205 = vsel %vm203, %v202, 0
      %vm207 = vcmask 1045504
      %v209 = vsel %vm207, %v183, 0
      %211 = vmatpush.bf16.msra.mxu0 0
      %212 = vmatpush.bf16.msra.mxu0 0
      %213 = vmatpush.bf16.msra.mxu0 0
      %214 = vmatpush.bf16.msra.mxu0 0
      %215 = vmatpush.bf16.msra.mxu0 0
      %216 = vmatpush.bf16.msra.mxu0 0
      %217 = vmatpush.bf16.msra.mxu0 0
      %218 = vmatpush.bf16.msra.mxu0 %v209
      %219 = vmatmul.bf16.gmra.mxu0 %v205
      %v220 = vpop.f32.mrf.mxu0
      %v221 = vadd.f32 %v191, %v220
      %v222 = vpop.f32.mrf.mxu0
      %v223 = vadd.f32 %v196, %v222
      %224 = vdwg.mxu0
      %v225 = vsub.f32 0.0, %v223
      %v226 = vmul.f32 %v225, 1.442695
      %v227 = vpow.pop %v226
      %v228 = vadd.f32 %v227, 1.0
      %v229 = vrcp.pop %v228
      %v230 = vmul.f32 %v228, %v229
      %v231 = vsub.f32 1.0, %v230
      %v232 = vmul.f32 %v229, %v231
      %v233 = vadd.f32 %v229, %v232
      %vm234 = vweird.f32 %v228
      %vm235 = vweird.f32 %v229
      %vm236 = vmor %vm234, %vm235
      %v237 = vsel %vm236, %v229, %v233
      %v238 = vand.u32 2147483647, %v228
      %vm239 = vcmp.eq.f32.partialorder %v238, 8.507059e+37
      %v240 = vand.u32 %v228, 2147483648
      %v241 = vor.u32 1.1754944e-38, %v240
      %v242 = vsel %vm239, %v241, %v237
      %v243 = vmul.f32 1.0, %v242
      %v244 = vmul.f32 %v221, %v243
      %245 = vst [vmem:[%s165] sm:$0xff] %v244
      %p246 = scmp.lt.s32.totalorder %s14, 1
      %s247 = scalar_select %p246, %s14, 1
      %s248 = smul.addr %s247, 8
      %s249 = scalar_lea.vmem %s3, %s248
      // Predicated region
      $region33: #{st_conv_block.5} parent=31 // pred_check
        %p250 = pneg %p100
      $region34: #{st_conv_block.5} parent=31 // pred_check_branch
        %252 = sbr.rel (%p250) target = $region36
      $region35: #{st_conv_block.5} parent=31 // pred_region
        _
      $region36: #{st_conv_block.5} parent=31 // pred_fallthru
        _
    $region32: #{st_conv_block.5} parent=5 // pred_fallthru
      _
    %p253 = scmp.le.s32.totalorder 2, %s9
    // Predicated region
    $region37: #{st_conv_block.5} parent=5 // pred_check
      %p254 = pneg %p253
    $region38: #{st_conv_block.5} parent=5 // pred_check_branch
      %256 = sbr.rel (%p254) target = $region40
    $region39: #{st_conv_block.5} parent=5 // pred_region
      %s257 = ssub.s32 %s9, 2
      // Predicated region
      $region41: #{st_conv_block.5} parent=39 // pred_check
        %p258 = pneg %p106
      $region42: #{st_conv_block.5} parent=39 // pred_check_branch
        %260 = sbr.rel (%p258) target = $region44
      $region43: #{st_conv_block.5} parent=39 // pred_region
        %p261 = scmp.lt.s32.totalorder %s15, 1
        %s262 = scalar_select %p261, %s15, 1
        %s263 = smul.addr %s262, 8
        %s264 = scalar_lea.vmem %s3, %s263
      $region44: #{st_conv_block.5} parent=39 // pred_fallthru
        _
    $region40: #{st_conv_block.5} parent=5 // pred_fallthru
      _
  $region6: #{st_conv_block.5} parent=0 // loop_footer
    %s13 = sadd.s32 1, %s9
  $region7: #{st_conv_block.5} parent=0 // loop_footer_branch
    %8 = sbr.rel target = $region3
  $region8: #{st_conv_block.5} parent=0 // loop_exit
    _

// kernel: st_conv_block.6
$region0: #{st_conv_block.6}
  #allocation0 [shape = 'u32[]', space=smem, size = 0x4, offset = 0x4, fixed_abs, tag = 'smem constant byte address 0x4 - core index']
  #allocation1 [shape = 'u32[72,128]{1,0:T(1,128)}', space=vmem, size = 0x9000, scoped, tag = 'internal scratch']
  %s0 = inlined_call_operand.vmem [shape: f32[128,16], index: 0, kind: input, shape index: {}]
  %s1 = inlined_call_operand.vmem [shape: bf16[16,80], index: 1, kind: input, shape index: {}]
  %s2 = inlined_call_operand.vmem [shape: bf16[128,80], index: 2, kind: output, shape index: {}]
  %s3 = sld [smem:[#allocation0]]
  $region18: #{st_conv_block.6} parent=0
    _
  %s5 = ssub.s32 1, %s3
  %s6 = scalar_select 0, %s5, %s3
  // Predicated region
  $region2: #{st_conv_block.6} parent=0 // pred_check
    _
  $region3: #{st_conv_block.6} parent=0 // pred_check_branch
    %8 = sbr.rel (0) target = $region5
  $region4: #{st_conv_block.6} parent=0 // pred_region
    _
  $region5: #{st_conv_block.6} parent=0 // pred_fallthru
    _
  // Predicated region
  $region6: #{st_conv_block.6} parent=0 // pred_check
    _
  $region7: #{st_conv_block.6} parent=0 // pred_check_branch
    %10 = sbr.rel (0) target = $region9
  $region8: #{st_conv_block.6} parent=0 // pred_region
    _
  $region9: #{st_conv_block.6} parent=0 // pred_fallthru
    _
  %v12 = vld [vmem:[%s0] sm:$0xff]
  %v13 = vld [vmem:[%s0 + $0x8] sm:$0xff]
  %v14 = vld [vmem:[%s0 + $0x10] sm:$0xff]
  %v15 = vld [vmem:[%s0 + $0x18] sm:$0xff]
  %v16 = vld [vmem:[%s0 + $0x20] sm:$0xff]
  %v17 = vld [vmem:[%s0 + $0x28] sm:$0xff]
  %v18 = vld [vmem:[%s0 + $0x30] sm:$0xff]
  %v19 = vld [vmem:[%s0 + $0x38] sm:$0xff]
  %v20 = vld [vmem:[%s0 + $0x40] sm:$0xff]
  %v21 = vld [vmem:[%s0 + $0x48] sm:$0xff]
  %v22 = vld [vmem:[%s0 + $0x50] sm:$0xff]
  %v23 = vld [vmem:[%s0 + $0x58] sm:$0xff]
  %v24 = vld [vmem:[%s0 + $0x60] sm:$0xff]
  %v25 = vld [vmem:[%s0 + $0x68] sm:$0xff]
  %v26 = vld [vmem:[%s0 + $0x70] sm:$0xff]
  %v27 = vld [vmem:[%s0 + $0x78] sm:$0xff]
  %v28 = vpack.c.bf16 %v13, %v12
  %v29 = vpack.c.bf16 %v15, %v14
  %v30 = vpack.c.bf16 %v17, %v16
  %v31 = vpack.c.bf16 %v19, %v18
  %v32 = vpack.c.bf16 %v21, %v20
  %v33 = vpack.c.bf16 %v23, %v22
  %v34 = vpack.c.bf16 %v25, %v24
  %v35 = vpack.c.bf16 %v27, %v26
  %v36 = vld [vmem:[%s1] sm:$0xf]
  %v37 = vld [vmem:[%s1 + $0x4] sm:$0xf]
  %v40 = vunpack.c.l.b16 %v36
  %v41 = vunpack.c.l.b16 %v37
  %v42 = vpack.c.b16 %v41, %v40
  %vm44 = vcmask 130048
  %v46 = vsel %vm44, %v28, 0
  %v49 = vsel %vm44, %v29, 0
  %v52 = vsel %vm44, %v30, 0
  %v55 = vsel %vm44, %v31, 0
  %v58 = vsel %vm44, %v32, 0
  %v61 = vsel %vm44, %v33, 0
  %v64 = vsel %vm44, %v34, 0
  %v67 = vsel %vm44, %v35, 0
  %69 = vmatpush.bf16.msra.mxu0 0
  %70 = vmatpush.bf16.msra.mxu0 0
  %71 = vmatpush.bf16.msra.mxu0 0
  %72 = vmatpush.bf16.msra.mxu0 0
  %73 = vmatpush.bf16.msra.mxu0 0
  %74 = vmatpush.bf16.msra.mxu0 0
  %75 = vmatpush.bf16.msra.mxu0 0
  %76 = vmatpush.bf16.msra.mxu0 %v42
  %77 = vmatmul.bf16.gmra.mxu0 %v46
  %v78 = vpop.f32.mrf.mxu0
  %v79 = vadd.f32 0.0, %v78
  %v80 = vpop.f32.mrf.mxu0
  %v81 = vadd.f32 0.0, %v80
  %82 = vmatmul.bf16.gmra.mxu0 %v49
  %v83 = vpop.f32.mrf.mxu0
  %v84 = vadd.f32 0.0, %v83
  %v85 = vpop.f32.mrf.mxu0
  %v86 = vadd.f32 0.0, %v85
  %87 = vmatmul.bf16.gmra.mxu0 %v52
  %v88 = vpop.f32.mrf.mxu0
  %v89 = vadd.f32 0.0, %v88
  %v90 = vpop.f32.mrf.mxu0
  %v91 = vadd.f32 0.0, %v90
  %92 = vmatmul.bf16.gmra.mxu0 %v55
  %v93 = vpop.f32.mrf.mxu0
  %v94 = vadd.f32 0.0, %v93
  %v95 = vpop.f32.mrf.mxu0
  %v96 = vadd.f32 0.0, %v95
  %97 = vmatmul.bf16.gmra.mxu0 %v58
  %v98 = vpop.f32.mrf.mxu0
  %v99 = vadd.f32 0.0, %v98
  %v100 = vpop.f32.mrf.mxu0
  %v101 = vadd.f32 0.0, %v100
  %102 = vmatmul.bf16.gmra.mxu0 %v61
  %v103 = vpop.f32.mrf.mxu0
  %v104 = vadd.f32 0.0, %v103
  %v105 = vpop.f32.mrf.mxu0
  %v106 = vadd.f32 0.0, %v105
  %107 = vmatmul.bf16.gmra.mxu0 %v64
  %v108 = vpop.f32.mrf.mxu0
  %v109 = vadd.f32 0.0, %v108
  %v110 = vpop.f32.mrf.mxu0
  %v111 = vadd.f32 0.0, %v110
  %112 = vmatmul.bf16.gmra.mxu0 %v67
  %v113 = vpop.f32.mrf.mxu0
  %v114 = vadd.f32 0.0, %v113
  %v115 = vpop.f32.mrf.mxu0
  %v116 = vadd.f32 0.0, %v115
  %117 = vdwg.mxu0
  %v118 = vpack.c.bf16 %v79, %v79
  %v119 = vpack.c.bf16 %v81, %v81
  %v120 = vpack.c.bf16 %v84, %v84
  %v121 = vpack.c.bf16 %v86, %v86
  %v122 = vpack.c.bf16 %v89, %v89
  %v123 = vpack.c.bf16 %v91, %v91
  %v124 = vpack.c.bf16 %v94, %v94
  %v125 = vpack.c.bf16 %v96, %v96
  %v126 = vpack.c.bf16 %v99, %v99
  %v127 = vpack.c.bf16 %v101, %v101
  %v128 = vpack.c.bf16 %v104, %v104
  %v129 = vpack.c.bf16 %v106, %v106
  %v130 = vpack.c.bf16 %v109, %v109
  %v131 = vpack.c.bf16 %v111, %v111
  %v132 = vpack.c.bf16 %v114, %v114
  %v133 = vpack.c.bf16 %v116, %v116
  %vm134 = vcmask 650240
  %135 = vst.msk [vmem:[%s2] sm:$0xf] %vm134, %v118
  %136 = vst.msk [vmem:[%s2 + $0x4] sm:$0xf] %vm134, %v119
  %137 = vst.msk [vmem:[%s2 + $0x8] sm:$0xf] %vm134, %v120
  %138 = vst.msk [vmem:[%s2 + $0xc] sm:$0xf] %vm134, %v121
  %139 = vst.msk [vmem:[%s2 + $0x10] sm:$0xf] %vm134, %v122
  %140 = vst.msk [vmem:[%s2 + $0x14] sm:$0xf] %vm134, %v123
  %141 = vst.msk [vmem:[%s2 + $0x18] sm:$0xf] %vm134, %v124
  %142 = vst.msk [vmem:[%s2 + $0x1c] sm:$0xf] %vm134, %v125
  %143 = vst.msk [vmem:[%s2 + $0x20] sm:$0xf] %vm134, %v126
  %144 = vst.msk [vmem:[%s2 + $0x24] sm:$0xf] %vm134, %v127
  %145 = vst.msk [vmem:[%s2 + $0x28] sm:$0xf] %vm134, %v128
  %146 = vst.msk [vmem:[%s2 + $0x2c] sm:$0xf] %vm134, %v129
  %147 = vst.msk [vmem:[%s2 + $0x30] sm:$0xf] %vm134, %v130
  %148 = vst.msk [vmem:[%s2 + $0x34] sm:$0xf] %vm134, %v131
  %149 = vst.msk [vmem:[%s2 + $0x38] sm:$0xf] %vm134, %v132
  %150 = vst.msk [vmem:[%s2 + $0x3c] sm:$0xf] %vm134, %v133
  // Predicated region
  $region10: #{st_conv_block.6} parent=0 // pred_check
    _
  $region11: #{st_conv_block.6} parent=0 // pred_check_branch
    %152 = sbr.rel (0) target = $region13
  $region12: #{st_conv_block.6} parent=0 // pred_region
    _
  $region13: #{st_conv_block.6} parent=0 // pred_fallthru
    _
  // Predicated region
  $region14: #{st_conv_block.6} parent=0 // pred_check
    _
  $region15: #{st_conv_block.6} parent=0 // pred_check_branch
    %154 = sbr.rel (0) target = $region17
  $region16: #{st_conv_block.6} parent=0 // pred_region
    _
  $region17: #{st_conv_block.6} parent=0 // pred_fallthru
    _

// kernel: st_conv_block.7
$region0: #{st_conv_block.7}
  #allocation0 [shape = 'u32[]', space=smem, size = 0x4, offset = 0x4, fixed_abs, tag = 'smem constant byte address 0x4 - core index']
  #allocation1 [shape = 'u32[72,128]{1,0:T(1,128)}', space=vmem, size = 0x9000, scoped, tag = 'internal scratch']
  %s0 = inlined_call_operand.vmem [shape: bf16[256,40], index: 0, kind: input, shape index: {}]
  %s1 = inlined_call_operand.vmem [shape: bf16[40,8], index: 1, kind: input, shape index: {}]
  %s2 = inlined_call_operand.vmem [shape: f32[256,8], index: 2, kind: input, shape index: {}]
  %s3 = inlined_call_operand.vmem [shape: f32[256,8], index: 3, kind: output, shape index: {}]
  %s4 = sld [smem:[#allocation0]]
  $region22: #{st_conv_block.7} parent=0
    _
  %s6 = ssub.s32 1, %s4
  %s7 = scalar_select 0, %s6, %s4
  // Predicated region
  $region2: #{st_conv_block.7} parent=0 // pred_check
    _
  $region3: #{st_conv_block.7} parent=0 // pred_check_branch
    %9 = sbr.rel (0) target = $region5
  $region4: #{st_conv_block.7} parent=0 // pred_region
    _
  $region5: #{st_conv_block.7} parent=0 // pred_fallthru
    _
  // Predicated region
  $region6: #{st_conv_block.7} parent=0 // pred_check
    _
  $region7: #{st_conv_block.7} parent=0 // pred_check_branch
    %11 = sbr.rel (0) target = $region9
  $region8: #{st_conv_block.7} parent=0 // pred_region
    _
  $region9: #{st_conv_block.7} parent=0 // pred_fallthru
    _
  // Predicated region
  $region10: #{st_conv_block.7} parent=0 // pred_check
    _
  $region11: #{st_conv_block.7} parent=0 // pred_check_branch
    %13 = sbr.rel (0) target = $region13
  $region12: #{st_conv_block.7} parent=0 // pred_region
    _
  $region13: #{st_conv_block.7} parent=0 // pred_fallthru
    _
  %v15 = vld [vmem:[%s0] sm:$0xf]
  %v16 = vld [vmem:[%s0 + $0x4] sm:$0xf]
  %v17 = vld [vmem:[%s0 + $0x8] sm:$0xf]
  %v18 = vld [vmem:[%s0 + $0xc] sm:$0xf]
  %v19 = vld [vmem:[%s0 + $0x10] sm:$0xf]
  %v20 = vld [vmem:[%s0 + $0x14] sm:$0xf]
  %v21 = vld [vmem:[%s0 + $0x18] sm:$0xf]
  %v22 = vld [vmem:[%s0 + $0x1c] sm:$0xf]
  %v23 = vld [vmem:[%s0 + $0x20] sm:$0xf]
  %v24 = vld [vmem:[%s0 + $0x24] sm:$0xf]
  %v25 = vld [vmem:[%s0 + $0x28] sm:$0xf]
  %v26 = vld [vmem:[%s0 + $0x2c] sm:$0xf]
  %v27 = vld [vmem:[%s0 + $0x30] sm:$0xf]
  %v28 = vld [vmem:[%s0 + $0x34] sm:$0xf]
  %v29 = vld [vmem:[%s0 + $0x38] sm:$0xf]
  %v30 = vld [vmem:[%s0 + $0x3c] sm:$0xf]
  %v31 = vld [vmem:[%s0 + $0x40] sm:$0xf]
  %v32 = vld [vmem:[%s0 + $0x44] sm:$0xf]
  %v33 = vld [vmem:[%s0 + $0x48] sm:$0xf]
  %v34 = vld [vmem:[%s0 + $0x4c] sm:$0xf]
  %v35 = vld [vmem:[%s0 + $0x50] sm:$0xf]
  %v36 = vld [vmem:[%s0 + $0x54] sm:$0xf]
  %v37 = vld [vmem:[%s0 + $0x58] sm:$0xf]
  %v38 = vld [vmem:[%s0 + $0x5c] sm:$0xf]
  %v39 = vld [vmem:[%s0 + $0x60] sm:$0xf]
  %v40 = vld [vmem:[%s0 + $0x64] sm:$0xf]
  %v41 = vld [vmem:[%s0 + $0x68] sm:$0xf]
  %v42 = vld [vmem:[%s0 + $0x6c] sm:$0xf]
  %v43 = vld [vmem:[%s0 + $0x70] sm:$0xf]
  %v44 = vld [vmem:[%s0 + $0x74] sm:$0xf]
  %v45 = vld [vmem:[%s0 + $0x78] sm:$0xf]
  %v46 = vld [vmem:[%s0 + $0x7c] sm:$0xf]
  %v47 = vld [vmem:[%s1] sm:$0xf]
  %v48 = vld [vmem:[%s1 + $0x4] sm:$0xf]
  %v49 = vld [vmem:[%s1 + $0x8] sm:$0xf]
  %v50 = vld [vmem:[%s1 + $0xc] sm:$0xf]
  %v51 = vld [vmem:[%s1 + $0x10] sm:$0xf]
  %v52 = vld [vmem:[%s2] sm:$0xff]
  %v53 = vld [vmem:[%s2 + $0x8] sm:$0xff]
  %v54 = vld [vmem:[%s2 + $0x10] sm:$0xff]
  %v55 = vld [vmem:[%s2 + $0x18] sm:$0xff]
  %v56 = vld [vmem:[%s2 + $0x20] sm:$0xff]
  %v57 = vld [vmem:[%s2 + $0x28] sm:$0xff]
  %v58 = vld [vmem:[%s2 + $0x30] sm:$0xff]
  %v59 = vld [vmem:[%s2 + $0x38] sm:$0xff]
  %v60 = vld [vmem:[%s2 + $0x40] sm:$0xff]
  %v61 = vld [vmem:[%s2 + $0x48] sm:$0xff]
  %v62 = vld [vmem:[%s2 + $0x50] sm:$0xff]
  %v63 = vld [vmem:[%s2 + $0x58] sm:$0xff]
  %v64 = vld [vmem:[%s2 + $0x60] sm:$0xff]
  %v65 = vld [vmem:[%s2 + $0x68] sm:$0xff]
  %v66 = vld [vmem:[%s2 + $0x70] sm:$0xff]
  %v67 = vld [vmem:[%s2 + $0x78] sm:$0xff]
  %v68 = vld [vmem:[%s2 + $0x80] sm:$0xff]
  %v69 = vld [vmem:[%s2 + $0x88] sm:$0xff]
  %v70 = vld [vmem:[%s2 + $0x90] sm:$0xff]
  %v71 = vld [vmem:[%s2 + $0x98] sm:$0xff]
  %v72 = vld [vmem:[%s2 + $0xa0] sm:$0xff]
  %v73 = vld [vmem:[%s2 + $0xa8] sm:$0xff]
  %v74 = vld [vmem:[%s2 + $0xb0] sm:$0xff]
  %v75 = vld [vmem:[%s2 + $0xb8] sm:$0xff]
  %v76 = vld [vmem:[%s2 + $0xc0] sm:$0xff]
  %v77 = vld [vmem:[%s2 + $0xc8] sm:$0xff]
  %v78 = vld [vmem:[%s2 + $0xd0] sm:$0xff]
  %v79 = vld [vmem:[%s2 + $0xd8] sm:$0xff]
  %v80 = vld [vmem:[%s2 + $0xe0] sm:$0xff]
  %v81 = vld [vmem:[%s2 + $0xe8] sm:$0xff]
  %v82 = vld [vmem:[%s2 + $0xf0] sm:$0xff]
  %v83 = vld [vmem:[%s2 + $0xf8] sm:$0xff]
  %v116 = vunpack.c.l.b16 %v15
  %v117 = vunpack.c.l.b16 %v16
  %v118 = vunpack.c.l.b16 %v17
  %v119 = vunpack.c.l.b16 %v18
  %v120 = vunpack.c.l.b16 %v19
  %v121 = vunpack.c.l.b16 %v20
  %v122 = vunpack.c.l.b16 %v21
  %v123 = vunpack.c.l.b16 %v22
  %v124 = vunpack.c.l.b16 %v23
  %v125 = vunpack.c.l.b16 %v24
  %v126 = vunpack.c.l.b16 %v25
  %v127 = vunpack.c.l.b16 %v26
  %v128 = vunpack.c.l.b16 %v27
  %v129 = vunpack.c.l.b16 %v28
  %v130 = vunpack.c.l.b16 %v29
  %v131 = vunpack.c.l.b16 %v30
  %v132 = vunpack.c.l.b16 %v31
  %v133 = vunpack.c.l.b16 %v32
  %v134 = vunpack.c.l.b16 %v33
  %v135 = vunpack.c.l.b16 %v34
  %v136 = vunpack.c.l.b16 %v35
  %v137 = vunpack.c.l.b16 %v36
  %v138 = vunpack.c.l.b16 %v37
  %v139 = vunpack.c.l.b16 %v38
  %v140 = vunpack.c.l.b16 %v39
  %v141 = vunpack.c.l.b16 %v40
  %v142 = vunpack.c.l.b16 %v41
  %v143 = vunpack.c.l.b16 %v42
  %v144 = vunpack.c.l.b16 %v43
  %v145 = vunpack.c.l.b16 %v44
  %v146 = vunpack.c.l.b16 %v45
  %v147 = vunpack.c.l.b16 %v46
  %v148 = vpack.c.b16 %v117, %v116
  %v149 = vpack.c.b16 %v119, %v118
  %v150 = vpack.c.b16 %v121, %v120
  %v151 = vpack.c.b16 %v123, %v122
  %v152 = vpack.c.b16 %v125, %v124
  %v153 = vpack.c.b16 %v127, %v126
  %v154 = vpack.c.b16 %v129, %v128
  %v155 = vpack.c.b16 %v131, %v130
  %v156 = vpack.c.b16 %v133, %v132
  %v157 = vpack.c.b16 %v135, %v134
  %v158 = vpack.c.b16 %v137, %v136
  %v159 = vpack.c.b16 %v139, %v138
  %v160 = vpack.c.b16 %v141, %v140
  %v161 = vpack.c.b16 %v143, %v142
  %v162 = vpack.c.b16 %v145, %v144
  %v163 = vpack.c.b16 %v147, %v146
  %v169 = vunpack.c.l.b16 %v47
  %v170 = vunpack.c.l.b16 %v48
  %v171 = vunpack.c.l.b16 %v49
  %v172 = vunpack.c.l.b16 %v50
  %v173 = vunpack.c.l.b16 %v51
  %v174 = vpack.c.b16 %v170, %v169
  %v175 = vpack.c.b16 %v172, %v171
  %v176 = vpack.c.b16 %v173, %v173
  %vm179 = vcmask 326656
  %v181 = vsel %vm179, %v148, 0
  %v184 = vsel %vm179, %v149, 0
  %v187 = vsel %vm179, %v150, 0
  %v190 = vsel %vm179, %v151, 0
  %v193 = vsel %vm179, %v152, 0
  %v196 = vsel %vm179, %v153, 0
  %v199 = vsel %vm179, %v154, 0
  %v202 = vsel %vm179, %v155, 0
  %v205 = vsel %vm179, %v156, 0
  %v208 = vsel %vm179, %v157, 0
  %v211 = vsel %vm179, %v158, 0
  %v214 = vsel %vm179, %v159, 0
  %v217 = vsel %vm179, %v160, 0
  %v220 = vsel %vm179, %v161, 0
  %v223 = vsel %vm179, %v162, 0
  %v226 = vsel %vm179, %v163, 0
  %vm228 = vcmask 1043456
  %v230 = vsel %vm228, %v176, 0
  %232 = vmatpush.bf16.msra.mxu0 0
  %233 = vmatpush.bf16.msra.mxu0 0
  %234 = vmatpush.bf16.msra.mxu0 0
  %235 = vmatpush.bf16.msra.mxu0 0
  %236 = vmatpush.bf16.msra.mxu0 0
  %237 = vmatpush.bf16.msra.mxu0 %v230
  %238 = vmatpush.bf16.msra.mxu0 %v175
  %239 = vmatpush.bf16.msra.mxu0 %v174
  %240 = vmatmul.bf16.gmra.mxu0 %v181
  %v241 = vpop.f32.mrf.mxu0
  %v242 = vadd.f32 %v52, %v241
  %v243 = vpop.f32.mrf.mxu0
  %v244 = vadd.f32 %v53, %v243
  %245 = vmatmul.bf16.gmra.mxu0 %v184
  %v246 = vpop.f32.mrf.mxu0
  %v247 = vadd.f32 %v54, %v246
  %v248 = vpop.f32.mrf.mxu0
  %v249 = vadd.f32 %v55, %v248
  %250 = vmatmul.bf16.gmra.mxu0 %v187
  %v251 = vpop.f32.mrf.mxu0
  %v252 = vadd.f32 %v56, %v251
  %v253 = vpop.f32.mrf.mxu0
  %v254 = vadd.f32 %v57, %v253
  %255 = vmatmul.bf16.gmra.mxu0 %v190
  %v256 = vpop.f32.mrf.mxu0
  %v257 = vadd.f32 %v58, %v256
  %v258 = vpop.f32.mrf.mxu0
  %v259 = vadd.f32 %v59, %v258
  %260 = vmatmul.bf16.gmra.mxu0 %v193
  %v261 = vpop.f32.mrf.mxu0
  %v262 = vadd.f32 %v60, %v261
  %v263 = vpop.f32.mrf.mxu0
  %v264 = vadd.f32 %v61, %v263
  %265 = vmatmul.bf16.gmra.mxu0 %v196
  %v266 = vpop.f32.mrf.mxu0
  %v267 = vadd.f32 %v62, %v266
  %v268 = vpop.f32.mrf.mxu0
  %v269 = vadd.f32 %v63, %v268
  %270 = vmatmul.bf16.gmra.mxu0 %v199
  %v271 = vpop.f32.mrf.mxu0
  %v272 = vadd.f32 %v64, %v271
  %v273 = vpop.f32.mrf.mxu0
  %v274 = vadd.f32 %v65, %v273
  %275 = vmatmul.bf16.gmra.mxu0 %v202
  %v276 = vpop.f32.mrf.mxu0
  %v277 = vadd.f32 %v66, %v276
  %v278 = vpop.f32.mrf.mxu0
  %v279 = vadd.f32 %v67, %v278
  %280 = vmatmul.bf16.gmra.mxu0 %v205
  %v281 = vpop.f32.mrf.mxu0
  %v282 = vadd.f32 %v68, %v281
  %v283 = vpop.f32.mrf.mxu0
  %v284 = vadd.f32 %v69, %v283
  %285 = vmatmul.bf16.gmra.mxu0 %v208
  %v286 = vpop.f32.mrf.mxu0
  %v287 = vadd.f32 %v70, %v286
  %v288 = vpop.f32.mrf.mxu0
  %v289 = vadd.f32 %v71, %v288
  %290 = vmatmul.bf16.gmra.mxu0 %v211
  %v291 = vpop.f32.mrf.mxu0
  %v292 = vadd.f32 %v72, %v291
  %v293 = vpop.f32.mrf.mxu0
  %v294 = vadd.f32 %v73, %v293
  %295 = vmatmul.bf16.gmra.mxu0 %v214
  %v296 = vpop.f32.mrf.mxu0
  %v297 = vadd.f32 %v74, %v296
  %v298 = vpop.f32.mrf.mxu0
  %v299 = vadd.f32 %v75, %v298
  %300 = vmatmul.bf16.gmra.mxu0 %v217
  %v301 = vpop.f32.mrf.mxu0
  %v302 = vadd.f32 %v76, %v301
  %v303 = vpop.f32.mrf.mxu0
  %v304 = vadd.f32 %v77, %v303
  %305 = vmatmul.bf16.gmra.mxu0 %v220
  %v306 = vpop.f32.mrf.mxu0
  %v307 = vadd.f32 %v78, %v306
  %v308 = vpop.f32.mrf.mxu0
  %v309 = vadd.f32 %v79, %v308
  %310 = vmatmul.bf16.gmra.mxu0 %v223
  %v311 = vpop.f32.mrf.mxu0
  %v312 = vadd.f32 %v80, %v311
  %v313 = vpop.f32.mrf.mxu0
  %v314 = vadd.f32 %v81, %v313
  %315 = vmatmul.bf16.gmra.mxu0 %v226
  %v316 = vpop.f32.mrf.mxu0
  %v317 = vadd.f32 %v82, %v316
  %v318 = vpop.f32.mrf.mxu0
  %v319 = vadd.f32 %v83, %v318
  %320 = vdwg.mxu0
  %v321 = vmax.f32 %v242, 0.0
  %v322 = vmax.f32 %v244, 0.0
  %v323 = vmax.f32 %v247, 0.0
  %v324 = vmax.f32 %v249, 0.0
  %v325 = vmax.f32 %v252, 0.0
  %v326 = vmax.f32 %v254, 0.0
  %v327 = vmax.f32 %v257, 0.0
  %v328 = vmax.f32 %v259, 0.0
  %v329 = vmax.f32 %v262, 0.0
  %v330 = vmax.f32 %v264, 0.0
  %v331 = vmax.f32 %v267, 0.0
  %v332 = vmax.f32 %v269, 0.0
  %v333 = vmax.f32 %v272, 0.0
  %v334 = vmax.f32 %v274, 0.0
  %v335 = vmax.f32 %v277, 0.0
  %v336 = vmax.f32 %v279, 0.0
  %v337 = vmax.f32 %v282, 0.0
  %v338 = vmax.f32 %v284, 0.0
  %v339 = vmax.f32 %v287, 0.0
  %v340 = vmax.f32 %v289, 0.0
  %v341 = vmax.f32 %v292, 0.0
  %v342 = vmax.f32 %v294, 0.0
  %v343 = vmax.f32 %v297, 0.0
  %v344 = vmax.f32 %v299, 0.0
  %v345 = vmax.f32 %v302, 0.0
  %v346 = vmax.f32 %v304, 0.0
  %v347 = vmax.f32 %v307, 0.0
  %v348 = vmax.f32 %v309, 0.0
  %v349 = vmax.f32 %v312, 0.0
  %v350 = vmax.f32 %v314, 0.0
  %v351 = vmax.f32 %v317, 0.0
  %v352 = vmax.f32 %v319, 0.0
  %vm353 = vcmask 64512
  %354 = vst.msk [vmem:[%s3] sm:$0xff] %vm353, %v321
  %355 = vst.msk [vmem:[%s3 + $0x8] sm:$0xff] %vm353, %v322
  %356 = vst.msk [vmem:[%s3 + $0x10] sm:$0xff] %vm353, %v323
  %357 = vst.msk [vmem:[%s3 + $0x18] sm:$0xff] %vm353, %v324
  %358 = vst.msk [vmem:[%s3 + $0x20] sm:$0xff] %vm353, %v325
  %359 = vst.msk [vmem:[%s3 + $0x28] sm:$0xff] %vm353, %v326
  %360 = vst.msk [vmem:[%s3 + $0x30] sm:$0xff] %vm353, %v327
  %361 = vst.msk [vmem:[%s3 + $0x38] sm:$0xff] %vm353, %v328
  %362 = vst.msk [vmem:[%s3 + $0x40] sm:$0xff] %vm353, %v329
  %363 = vst.msk [vmem:[%s3 + $0x48] sm:$0xff] %vm353, %v330
  %364 = vst.msk [vmem:[%s3 + $0x50] sm:$0xff] %vm353, %v331
  %365 = vst.msk [vmem:[%s3 + $0x58] sm:$0xff] %vm353, %v332
  %366 = vst.msk [vmem:[%s3 + $0x60] sm:$0xff] %vm353, %v333
  %367 = vst.msk [vmem:[%s3 + $0x68] sm:$0xff] %vm353, %v334
  %368 = vst.msk [vmem:[%s3 + $0x70] sm:$0xff] %vm353, %v335
  %369 = vst.msk [vmem:[%s3 + $0x78] sm:$0xff] %vm353, %v336
  %370 = vst.msk [vmem:[%s3 + $0x80] sm:$0xff] %vm353, %v337
  %371 = vst.msk [vmem:[%s3 + $0x88] sm:$0xff] %vm353, %v338
  %372 = vst.msk [vmem:[%s3 + $0x90] sm:$0xff] %vm353, %v339
  %373 = vst.msk [vmem:[%s3 + $0x98] sm:$0xff] %vm353, %v340
  %374 = vst.msk [vmem:[%s3 + $0xa0] sm:$0xff] %vm353, %v341
  %375 = vst.msk [vmem:[%s3 + $0xa8] sm:$0xff] %vm353, %v342
  %376 = vst.msk [vmem:[%s3 + $0xb0] sm:$0xff] %vm353, %v343
  %377 = vst.msk [vmem:[%s3 + $0xb8] sm:$0xff] %vm353, %v344
  %378 = vst.msk [vmem:[%s3 + $0xc0] sm:$0xff] %vm353, %v345
  %379 = vst.msk [vmem:[%s3 + $0xc8] sm:$0xff] %vm353, %v346
  %380 = vst.msk [vmem:[%s3 + $0xd0] sm:$0xff] %vm353, %v347
  %381 = vst.msk [vmem:[%s3 + $0xd8] sm:$0xff] %vm353, %v348
  %382 = vst.msk [vmem:[%s3 + $0xe0] sm:$0xff] %vm353, %v349
  %383 = vst.msk [vmem:[%s3 + $0xe8] sm:$0xff] %vm353, %v350
  %384 = vst.msk [vmem:[%s3 + $0xf0] sm:$0xff] %vm353, %v351
  %385 = vst.msk [vmem:[%s3 + $0xf8] sm:$0xff] %vm353, %v352
  // Predicated region
  $region14: #{st_conv_block.7} parent=0 // pred_check
    _
  $region15: #{st_conv_block.7} parent=0 // pred_check_branch
    %387 = sbr.rel (0) target = $region17
  $region16: #{st_conv_block.7} parent=0 // pred_region
    _
  $region17: #{st_conv_block.7} parent=0 // pred_fallthru
    _
  // Predicated region
  $region18: #{st_conv_block.7} parent=0 // pred_check
    _
  $region19: #{st_conv_block.7} parent=0 // pred_check_branch
    %389 = sbr.rel (0) target = $region21
  $region20: #{st_conv_block.7} parent=0 // pred_region
    _
  $region21: #{st_conv_block.7} parent=0 // pred_fallthru
    _

// kernel: st_conv_block.9
$region0: #{st_conv_block.9}
  #allocation0 [shape = 'u32[]', space=smem, size = 0x4, offset = 0x4, fixed_abs, tag = 'smem constant byte address 0x4 - core index']
  #allocation1 [shape = 'u32[72,128]{1,0:T(1,128)}', space=vmem, size = 0x9000, scoped, tag = 'internal scratch']
  %s0 = inlined_call_operand.vmem [shape: f32[8,128], index: 0, kind: input, shape index: {}]
  %s1 = inlined_call_operand.vmem [shape: f32[1,128], index: 1, kind: input, shape index: {}]
  %s2 = inlined_call_operand.vmem [shape: f32[1,128], index: 2, kind: input, shape index: {}]
  %s3 = inlined_call_operand.vmem [shape: f32[8,128], index: 3, kind: output, shape index: {}]
  %s4 = sld [smem:[#allocation0]]
  $region22: #{st_conv_block.9} parent=0
    _
  %s6 = ssub.s32 1, %s4
  %s7 = scalar_select 0, %s6, %s4
  // Predicated region
  $region2: #{st_conv_block.9} parent=0 // pred_check
    _
  $region3: #{st_conv_block.9} parent=0 // pred_check_branch
    %9 = sbr.rel (0) target = $region5
  $region4: #{st_conv_block.9} parent=0 // pred_region
    _
  $region5: #{st_conv_block.9} parent=0 // pred_fallthru
    _
  // Predicated region
  $region6: #{st_conv_block.9} parent=0 // pred_check
    _
  $region7: #{st_conv_block.9} parent=0 // pred_check_branch
    %11 = sbr.rel (0) target = $region9
  $region8: #{st_conv_block.9} parent=0 // pred_region
    _
  $region9: #{st_conv_block.9} parent=0 // pred_fallthru
    _
  // Predicated region
  $region10: #{st_conv_block.9} parent=0 // pred_check
    _
  $region11: #{st_conv_block.9} parent=0 // pred_check_branch
    %13 = sbr.rel (0) target = $region13
  $region12: #{st_conv_block.9} parent=0 // pred_region
    _
  $region13: #{st_conv_block.9} parent=0 // pred_fallthru
    _
  %v14 = vld [vmem:[%s0] sm:$0xff]
  %v15 = vld [vmem:[%s1] sm:$0x1]
  %v17 = vperm.slane %v15, 0
  %v19 = vmul.f32 %v14, %v17
  %v20 = vld [vmem:[%s2] sm:$0x1]
  %v22 = vperm.slane %v20, 0
  %v24 = vadd.f32 %v19, %v22
  %25 = vst [vmem:[%s3] sm:$0xff] %v24
  // Predicated region
  $region14: #{st_conv_block.9} parent=0 // pred_check
    _
  $region15: #{st_conv_block.9} parent=0 // pred_check_branch
    %27 = sbr.rel (0) target = $region17
  $region16: #{st_conv_block.9} parent=0 // pred_region
    _
  $region17: #{st_conv_block.9} parent=0 // pred_fallthru
    _
  // Predicated region
  $region18: #{st_conv_block.9} parent=0 // pred_check
    _
  $region19: #{st_conv_block.9} parent=0 // pred_check_branch
    %29 = sbr.rel (0) target = $region21
  $region20: #{st_conv_block.9} parent=0 // pred_region
    _
  $region21: #{st_conv_block.9} parent=0 // pred_fallthru
    _

// kernel: st_conv_block.8
$region0: #{st_conv_block.8}
  #allocation0 [shape = 'u32[]', space=smem, size = 0x4, offset = 0x4, fixed_abs, tag = 'smem constant byte address 0x4 - core index']
  #allocation1 [shape = 'u32[72,128]{1,0:T(1,128)}', space=vmem, size = 0x9000, scoped, tag = 'internal scratch']
  %s0 = inlined_call_operand.vmem [shape: f32[2,8,128], index: 0, kind: input, shape index: {}]
  %s1 = inlined_call_operand.vmem [shape: bf16[8,24], index: 1, kind: input, shape index: {}]
  %s2 = inlined_call_operand.vmem [shape: f32[8,1], index: 2, kind: input, shape index: {}]
  %s3 = inlined_call_operand.vmem [shape: f32[2,4,128], index: 3, kind: output, shape index: {0}]
  %s4 = inlined_call_operand.vmem [shape: f32[2,1,16], index: 4, kind: output, shape index: {1}]
  %s5 = inlined_call_operand.vmem [shape: f32[2,1,16], index: 5, kind: output, shape index: {2}]
  %6 = xla_tuple %s3, %s4, %s5
  %s7 = sld [smem:[#allocation0]]
  $region61: #{st_conv_block.8} parent=0
    _
  %s9 = ssub.s32 1, %s7
  %s10 = scalar_select 0, %s9, %s7
  loop: start=0, step=1, limit=4
  $region2: #{st_conv_block.8} parent=0 // loop_pre_header
    _
  $region3: #{st_conv_block.8} parent=0 // loop_header
    %s12 = sphi 0, %s16
    %p13 = scmp.ge.s32.totalorder %s12, 4
    %s22 = sphi 0, %s24
    %s25 = sphi 0, %s22
    %s26 = sphi 0, %s25
    %s42 = sphi 0, %s26
    %s46 = sphi 0, %s46
    %s48 = sphi 0, %s46
    %s49 = sphi 0, %s48
    %s63 = sphi 0, %s49
    %s67 = sphi 0, %s67
    %s69 = sphi 0, %s67
    %s70 = sphi 0, %s69
    %s84 = sphi 0, %s70
    %s90 = sphi 0, %s92
    %s93 = sphi 0, %s90
    %s94 = sphi 0, %s93
    %s110 = sphi 0, %s94
    %s116 = sphi 0, %s118
    %s119 = sphi 0, %s116
    %s120 = sphi 0, %s119
    %s136 = sphi 0, %s120
    %s142 = sphi 0, %s144
    %s145 = sphi 0, %s142
    %s146 = sphi 0, %s145
    %s162 = sphi 0, %s146
  $region4: #{st_conv_block.8} parent=0 // loop_header_branch
    %15 = sbr.rel (%p13) target = $region8
  $region5: #{st_conv_block.8} parent=0 // loop_body
    %s17 = ssub.s32 %s12, 1
    %s18 = ssub.s32 %s12, 2
    %s19 = sadd.s32 %s12, 1
    %s20 = ssub.s32 %s12, %s19
    %p21 = scmp.eq.s32.totalorder %s20, 0
    %s23 = sadd.s32 %s22, 1
    %s24 = scalar_select %p21, %s22, %s23
    %p27 = pneg %p21
    %p28 = scmp.eq.s32.totalorder %s12, 1
    %p29 = por %p27, %p28
    %p30 = scmp.ne.s32.totalorder %s22, %s25
    %p31 = scmp.eq.s32.totalorder %s12, 0
    %p32 = por %p30, %p31
    %p33 = scmp.ne.s32.totalorder %s22, %s25
    %p34 = scmp.eq.s32.totalorder %s17, 1
    %p35 = por %p33, %p34
    %p36 = scmp.ne.s32.totalorder %s25, %s26
    %p37 = scmp.eq.s32.totalorder %s17, 0
    %p38 = por %p36, %p37
    %p39 = scmp.ne.s32.totalorder %s25, %s26
    %p40 = scmp.eq.s32.totalorder %s18, 1
    %p41 = por %p39, %p40
    %p43 = scmp.ne.s32.totalorder %s26, %s42
    %p44 = scmp.eq.s32.totalorder %s18, 0
    %p45 = por %p43, %p44
    %s47 = sadd.s32 %s46, 1
    %p50 = scmp.eq.s32.totalorder %s12, 1
    %p51 = scmp.ne.s32.totalorder %s46, %s48
    %p52 = scmp.eq.s32.totalorder %s12, 0
    %p53 = por %p51, %p52
    %p54 = scmp.ne.s32.totalorder %s46, %s48
    %p55 = scmp.eq.s32.totalorder %s17, 1
    %p56 = por %p54, %p55
    %p57 = scmp.ne.s32.totalorder %s48, %s49
    %p58 = scmp.eq.s32.totalorder %s17, 0
    %p59 = por %p57, %p58
    %p60 = scmp.ne.s32.totalorder %s48, %s49
    %p61 = scmp.eq.s32.totalorder %s18, 1
    %p62 = por %p60, %p61
    %p64 = scmp.ne.s32.totalorder %s49, %s63
    %p65 = scmp.eq.s32.totalorder %s18, 0
    %p66 = por %p64, %p65
    %s68 = sadd.s32 %s67, 1
    %p71 = scmp.eq.s32.totalorder %s12, 1
    %p72 = scmp.ne.s32.totalorder %s67, %s69
    %p73 = scmp.eq.s32.totalorder %s12, 0
    %p74 = por %p72, %p73
    %p75 = scmp.ne.s32.totalorder %s67, %s69
    %p76 = scmp.eq.s32.totalorder %s17, 1
    %p77 = por %p75, %p76
    %p78 = scmp.ne.s32.totalorder %s69, %s70
    %p79 = scmp.eq.s32.totalorder %s17, 0
    %p80 = por %p78, %p79
    %p81 = scmp.ne.s32.totalorder %s69, %s70
    %p82 = scmp.eq.s32.totalorder %s18, 1
    %p83 = por %p81, %p82
    %p85 = scmp.ne.s32.totalorder %s70, %s84
    %p86 = scmp.eq.s32.totalorder %s18, 0
    %p87 = por %p85, %p86
    %s88 = ssub.s32 %s12, %s19
    %p89 = scmp.eq.s32.totalorder %s88, 0
    %s91 = sadd.s32 %s90, 1
    %s92 = scalar_select %p89, %s90, %s91
    %p95 = pneg %p89
    %p96 = scmp.eq.s32.totalorder %s12, 1
    %p97 = por %p95, %p96
    %p98 = scmp.ne.s32.totalorder %s90, %s93
    %p99 = scmp.eq.s32.totalorder %s12, 0
    %p100 = por %p98, %p99
    %p101 = scmp.ne.s32.totalorder %s90, %s93
    %p102 = scmp.eq.s32.totalorder %s17, 1
    %p103 = por %p101, %p102
    %p104 = scmp.ne.s32.totalorder %s93, %s94
    %p105 = scmp.eq.s32.totalorder %s17, 0
    %p106 = por %p104, %p105
    %p107 = scmp.ne.s32.totalorder %s93, %s94
    %p108 = scmp.eq.s32.totalorder %s18, 1
    %p109 = por %p107, %p108
    %p111 = scmp.ne.s32.totalorder %s94, %s110
    %p112 = scmp.eq.s32.totalorder %s18, 0
    %p113 = por %p111, %p112
    %s114 = ssub.s32 %s12, %s19
    %p115 = scmp.eq.s32.totalorder %s114, 0
    %s117 = sadd.s32 %s116, 1
    %s118 = scalar_select %p115, %s116, %s117
    %p121 = pneg %p115
    %p122 = scmp.eq.s32.totalorder %s12, 1
    %p123 = por %p121, %p122
    %p124 = scmp.ne.s32.totalorder %s116, %s119
    %p125 = scmp.eq.s32.totalorder %s12, 0
    %p126 = por %p124, %p125
    %p127 = scmp.ne.s32.totalorder %s116, %s119
    %p128 = scmp.eq.s32.totalorder %s17, 1
    %p129 = por %p127, %p128
    %p130 = scmp.ne.s32.totalorder %s119, %s120
    %p131 = scmp.eq.s32.totalorder %s17, 0
    %p132 = por %p130, %p131
    %p133 = scmp.ne.s32.totalorder %s119, %s120
    %p134 = scmp.eq.s32.totalorder %s18, 1
    %p135 = por %p133, %p134
    %p137 = scmp.ne.s32.totalorder %s120, %s136
    %p138 = scmp.eq.s32.totalorder %s18, 0
    %p139 = por %p137, %p138
    %s140 = ssub.s32 %s12, %s19
    %p141 = scmp.eq.s32.totalorder %s140, 0
    %s143 = sadd.s32 %s142, 1
    %s144 = scalar_select %p141, %s142, %s143
    %p147 = pneg %p141
    %p148 = scmp.eq.s32.totalorder %s12, 1
    %p149 = por %p147, %p148
    %p150 = scmp.ne.s32.totalorder %s142, %s145
    %p151 = scmp.eq.s32.totalorder %s12, 0
    %p152 = por %p150, %p151
    %p153 = scmp.ne.s32.totalorder %s142, %s145
    %p154 = scmp.eq.s32.totalorder %s17, 1
    %p155 = por %p153, %p154
    %p156 = scmp.ne.s32.totalorder %s145, %s146
    %p157 = scmp.eq.s32.totalorder %s17, 0
    %p158 = por %p156, %p157
    %p159 = scmp.ne.s32.totalorder %s145, %s146
    %p160 = scmp.eq.s32.totalorder %s18, 1
    %p161 = por %p159, %p160
    %p163 = scmp.ne.s32.totalorder %s146, %s162
    %p164 = scmp.eq.s32.totalorder %s18, 0
    %p165 = por %p163, %p164
    %p166 = scmp.le.s32.totalorder 1, %s12
    %p167 = scmp.lt.s32.totalorder %s12, 3
    %p168 = pnand %p166, %p167
    %p169 = pneg %p168
    // Predicated region
    $region9: #{st_conv_block.8} parent=5 // pred_check
      _
    $region10: #{st_conv_block.8} parent=5 // pred_check_branch
      %171 = sbr.rel (%p168) target = $region12
    $region11: #{st_conv_block.8} parent=5 // pred_region
      %s172 = ssub.s32 %s12, 1
      // Predicated region
      $region13: #{st_conv_block.8} parent=11 // pred_check
        %p173 = pneg %p59
      $region14: #{st_conv_block.8} parent=11 // pred_check_branch
        %175 = sbr.rel (%p173) target = $region16
      $region15: #{st_conv_block.8} parent=11 // pred_region
        _
      $region16: #{st_conv_block.8} parent=11 // pred_fallthru
        _
      // Predicated region
      $region17: #{st_conv_block.8} parent=11 // pred_check
        %p176 = pneg %p80
      $region18: #{st_conv_block.8} parent=11 // pred_check_branch
        %178 = sbr.rel (%p176) target = $region20
      $region19: #{st_conv_block.8} parent=11 // pred_region
        _
      $region20: #{st_conv_block.8} parent=11 // pred_fallthru
        _
    $region12: #{st_conv_block.8} parent=5 // pred_fallthru
      _
    %p179 = scmp.lt.s32.totalorder %s12, 2
    // Predicated region
    $region21: #{st_conv_block.8} parent=5 // pred_check
      %p180 = pneg %p179
    $region22: #{st_conv_block.8} parent=5 // pred_check_branch
      %182 = sbr.rel (%p180) target = $region24
    $region23: #{st_conv_block.8} parent=5 // pred_region
      // Predicated region
      $region25: #{st_conv_block.8} parent=23 // pred_check
        %p183 = pneg %p32
      $region26: #{st_conv_block.8} parent=23 // pred_check_branch
        %185 = sbr.rel (%p183) target = $region28
      $region27: #{st_conv_block.8} parent=23 // pred_region
        %p186 = scmp.lt.s32.totalorder %s12, 1
        %s187 = scalar_select %p186, %s12, 1
        %s188 = smul.addr %s187, 8
        %s189 = scalar_lea.vmem %s0, %s188
      $region28: #{st_conv_block.8} parent=23 // pred_fallthru
        _
    $region24: #{st_conv_block.8} parent=5 // pred_fallthru
      _
    %p190 = scmp.le.s32.totalorder 1, %s12
    %p191 = scmp.lt.s32.totalorder %s12, 3
    %p192 = pnand %p190, %p191
    %p193 = pneg %p192
    // Predicated region
    $region29: #{st_conv_block.8} parent=5 // pred_check
      _
    $region30: #{st_conv_block.8} parent=5 // pred_check_branch
      %195 = sbr.rel (%p192) target = $region32
    $region31: #{st_conv_block.8} parent=5 // pred_region
      %s196 = ssub.s32 %s12, 1
      %p197 = scmp.lt.s32.totalorder %s17, 1
      %s198 = scalar_select %p197, %s17, 1
      %s199 = smul.addr %s198, 8
      %s200 = scalar_lea.vmem %s0, %s199
      %p201 = pneg %p38
      %p202 = pneg %p35
      %p203 = pneg %p59
      %p204 = pneg %p56
      %p205 = pneg %p80
      %p206 = pneg %p77
      %p207 = pneg %p106
      %p208 = pneg %p103
      %p209 = scmp.lt.s32.totalorder %s17, 1
      %s210 = scalar_select %p209, %s17, 1
      %s211 = smul.addr %s210, 4
      %s212 = scalar_lea.vmem %s3, %s211
      %p213 = pneg %p132
      %p214 = pneg %p129
      %p215 = scmp.lt.s32.totalorder %s17, 1
      %s216 = scalar_select %p215, %s17, 1
      %s217 = scalar_lea.vmem %s4, %s216
      %p218 = pneg %p158
      %p219 = pneg %p155
      %p220 = scmp.lt.s32.totalorder %s17, 1
      %s221 = scalar_select %p220, %s17, 1
      %s222 = scalar_lea.vmem %s5, %s221
      %p223 = scmp.lt.s32.totalorder %s17, 1
      %s224 = scalar_select %p223, %s17, 1
      %s225 = smul.addr %s224, 8
      %s226 = scalar_lea.vmem %s0, %s225
      %p227 = scmp.lt.s32.totalorder %s17, 1
      %s228 = scalar_select %p227, %s17, 1
      %s229 = smul.addr %s228, 4
      %s230 = scalar_lea.vmem %s3, %s229
      %p231 = scmp.lt.s32.totalorder %s17, 1
      %s232 = scalar_select %p231, %s17, 1
      %s233 = scalar_lea.vmem %s4, %s232
      %p234 = scmp.lt.s32.totalorder %s17, 1
      %s235 = scalar_select %p234, %s17, 1
      %s236 = scalar_lea.vmem %s5, %s235
      %v238 = vld [vmem:[%s226] sm:$0xff]
      %240 = vrot.lane.b32.xlu0 %v238, 16
      %v241 = vpop.permute.xlu0 %240
      %vm243 = vcmask 130048
      %v244 = vsel %vm243, 0.0, %v241
      %245 = vrot.lane.b32.xlu0 %v238, 112
      %v246 = vpop.permute.xlu0 %245
      %vm248 = vcmask 916480
      %v249 = vsel %vm248, %v246, 0.0
      %v250 = vpack.c.bf16 %v238, %v244
      %v251 = vpack.c.bf16 %v249, %v249
      %v252 = vld [vmem:[%s1] sm:$0xf]
      %v253 = vld [vmem:[%s2] sm:$0xff]
      %255 = vset.pattern.permute.xlu0 0
      %256 = vperm.xlu0 %255, %v253
      %v257 = vpop.permute.xlu0 %256
      %vm259 = vcmask 195584
      %v261 = vsel %vm259, %v252, 0
      %vm263 = vcmask 1043456
      %v265 = vsel %vm263, %v251, 0
      %267 = vmatpush.bf16.msra.mxu0 0
      %268 = vmatpush.bf16.msra.mxu0 0
      %269 = vmatpush.bf16.msra.mxu0 0
      %270 = vmatpush.bf16.msra.mxu0 0
      %271 = vmatpush.bf16.msra.mxu0 0
      %272 = vmatpush.bf16.msra.mxu0 0
      %273 = vmatpush.bf16.msra.mxu0 %v265
      %274 = vmatpush.bf16.msra.mxu0 %v250
      %275 = vmatmul.bf16.gmra.mxu0 %v261
      %v276 = vpop.f32.mrf.mxu0
      %v277 = vadd.f32 %v257, %v276
      %v278 = vpop.f32.mrf.mxu0
      %279 = vdwg.mxu0
      %v280 = vsub.f32 0.0, %v277
      %v281 = vmul.f32 %v280, 1.442695
      %v282 = vpow.pop %v281
      %v283 = vadd.f32 %v282, 1.0
      %v284 = vrcp.pop %v283
      %v285 = vmul.f32 %v283, %v284
      %v286 = vsub.f32 1.0, %v285
      %v287 = vmul.f32 %v284, %v286
      %v288 = vadd.f32 %v284, %v287
      %vm289 = vweird.f32 %v283
      %vm290 = vweird.f32 %v284
      %vm291 = vmor %vm289, %vm290
      %v292 = vsel %vm291, %v284, %v288
      %v293 = vand.u32 2147483647, %v283
      %vm294 = vcmp.eq.f32.partialorder %v293, 8.507059e+37
      %v295 = vand.u32 %v283, 2147483648
      %v296 = vor.u32 1.1754944e-38, %v295
      %v297 = vsel %vm294, %v296, %v292
      %v298 = vmul.f32 1.0, %v297
      %v300 = vrot.slane %v298, 4
      %v302 = vmul.f32 %v277, %v300
      %303 = vst [vmem:[%s230] sm:$0xf] %v302
      %v304 = vsel %vm263, %v302, 0.0
      %v305 = vrot.slane %v304, 4
      %v306 = vadd.f32 %v304, %v305
      %v307 = vrot.slane %v306, 2
      %v308 = vadd.f32 %v306, %v307
      %v309 = vrot.slane %v308, 1
      %v310 = vadd.f32 %v308, %v309
      %v311 = vmul.f32 %v302, %v302
      %v312 = vsel %vm263, %v311, 0.0
      %v313 = vrot.slane %v312, 4
      %v314 = vadd.f32 %v312, %v313
      %v315 = vrot.slane %v314, 2
      %v316 = vadd.f32 %v314, %v315
      %v317 = vrot.slane %v316, 1
      %v318 = vadd.f32 %v316, %v317
      %v319 = vadd.f32 %v310, 0.0
      %v320 = vadd.f32 %v318, 0.0
      %322 = vrot.lane.b32.xlu0 %v310, 112
      %v323 = vpop.permute.xlu0 %322
      %v325 = vadd.f32 %v319, %v323
      %327 = vrot.lane.b32.xlu0 %v318, 112
      %v328 = vpop.permute.xlu0 %327
      %v330 = vadd.f32 %v320, %v328
      %331 = vrot.lane.b32.xlu0 %v310, 96
      %v332 = vpop.permute.xlu0 %331
      %v334 = vadd.f32 %v325, %v332
      %335 = vrot.lane.b32.xlu0 %v318, 96
      %v336 = vpop.permute.xlu0 %335
      %v338 = vadd.f32 %v330, %v336
      %339 = vrot.lane.b32.xlu0 %v310, 80
      %v340 = vpop.permute.xlu0 %339
      %v342 = vadd.f32 %v334, %v340
      %343 = vrot.lane.b32.xlu0 %v318, 80
      %v344 = vpop.permute.xlu0 %343
      %v346 = vadd.f32 %v338, %v344
      %347 = vrot.lane.b32.xlu0 %v310, 64
      %v348 = vpop.permute.xlu0 %347
      %v350 = vadd.f32 %v342, %v348
      %351 = vrot.lane.b32.xlu0 %v318, 64
      %v352 = vpop.permute.xlu0 %351
      %v354 = vadd.f32 %v346, %v352
      %355 = vrot.lane.b32.xlu0 %v310, 48
      %v356 = vpop.permute.xlu0 %355
      %v358 = vadd.f32 %v350, %v356
      %359 = vrot.lane.b32.xlu0 %v318, 48
      %v360 = vpop.permute.xlu0 %359
      %v362 = vadd.f32 %v354, %v360
      %363 = vrot.lane.b32.xlu0 %v310, 32
      %v364 = vpop.permute.xlu0 %363
      %v366 = vadd.f32 %v358, %v364
      %367 = vrot.lane.b32.xlu0 %v318, 32
      %v368 = vpop.permute.xlu0 %367
      %v370 = vadd.f32 %v362, %v368
      %371 = vrot.lane.b32.xlu0 %v310, 16
      %v372 = vpop.permute.xlu0 %371
      %v374 = vadd.f32 %v366, %v372
      %375 = vrot.lane.b32.xlu0 %v318, 16
      %v376 = vpop.permute.xlu0 %375
      %v378 = vadd.f32 %v370, %v376
      %vm379 = vcmask 122880
      %380 = vst.msk [vmem:[%s233] sm:$0x1] %vm379, %v374
      %381 = vst.msk [vmem:[%s236] sm:$0x1] %vm379, %v378
      %p382 = scmp.lt.s32.totalorder %s17, 1
      %s383 = scalar_select %p382, %s17, 1
      %s384 = smul.addr %s383, 4
      %s385 = scalar_lea.vmem %s3, %s384
      %p386 = scmp.lt.s32.totalorder %s17, 1
      %s387 = scalar_select %p386, %s17, 1
      %s388 = scalar_lea.vmem %s4, %s387
      %p389 = scmp.lt.s32.totalorder %s17, 1
      %s390 = scalar_select %p389, %s17, 1
      %s391 = scalar_lea.vmem %s5, %s390
      // Predicated region
      $region33: #{st_conv_block.8} parent=31 // pred_check
        %p392 = pneg %p103
      $region34: #{st_conv_block.8} parent=31 // pred_check_branch
        %394 = sbr.rel (%p392) target = $region36
      $region35: #{st_conv_block.8} parent=31 // pred_region
        _
      $region36: #{st_conv_block.8} parent=31 // pred_fallthru
        _
      // Predicated region
      $region37: #{st_conv_block.8} parent=31 // pred_check
        %p395 = pneg %p129
      $region38: #{st_conv_block.8} parent=31 // pred_check_branch
        %397 = sbr.rel (%p395) target = $region40
      $region39: #{st_conv_block.8} parent=31 // pred_region
        _
      $region40: #{st_conv_block.8} parent=31 // pred_fallthru
        _
      // Predicated region
      $region41: #{st_conv_block.8} parent=31 // pred_check
        %p398 = pneg %p155
      $region42: #{st_conv_block.8} parent=31 // pred_check_branch
        %400 = sbr.rel (%p398) target = $region44
      $region43: #{st_conv_block.8} parent=31 // pred_region
        _
      $region44: #{st_conv_block.8} parent=31 // pred_fallthru
        _
    $region32: #{st_conv_block.8} parent=5 // pred_fallthru
      _
    %p401 = scmp.le.s32.totalorder 2, %s12
    // Predicated region
    $region45: #{st_conv_block.8} parent=5 // pred_check
      %p402 = pneg %p401
    $region46: #{st_conv_block.8} parent=5 // pred_check_branch
      %404 = sbr.rel (%p402) target = $region48
    $region47: #{st_conv_block.8} parent=5 // pred_region
      %s405 = ssub.s32 %s12, 2
      // Predicated region
      $region49: #{st_conv_block.8} parent=47 // pred_check
        %p406 = pneg %p109
      $region50: #{st_conv_block.8} parent=47 // pred_check_branch
        %408 = sbr.rel (%p406) target = $region52
      $region51: #{st_conv_block.8} parent=47 // pred_region
        %p409 = scmp.lt.s32.totalorder %s18, 1
        %s410 = scalar_select %p409, %s18, 1
        %s411 = smul.addr %s410, 4
        %s412 = scalar_lea.vmem %s3, %s411
      $region52: #{st_conv_block.8} parent=47 // pred_fallthru
        _
      // Predicated region
      $region53: #{st_conv_block.8} parent=47 // pred_check
        %p413 = pneg %p135
      $region54: #{st_conv_block.8} parent=47 // pred_check_branch
        %415 = sbr.rel (%p413) target = $region56
      $region55: #{st_conv_block.8} parent=47 // pred_region
        %p416 = scmp.lt.s32.totalorder %s18, 1
        %s417 = scalar_select %p416, %s18, 1
        %s418 = scalar_lea.vmem %s4, %s417
      $region56: #{st_conv_block.8} parent=47 // pred_fallthru
        _
      // Predicated region
      $region57: #{st_conv_block.8} parent=47 // pred_check
        %p419 = pneg %p161
      $region58: #{st_conv_block.8} parent=47 // pred_check_branch
        %421 = sbr.rel (%p419) target = $region60
      $region59: #{st_conv_block.8} parent=47 // pred_region
        %p422 = scmp.lt.s32.totalorder %s18, 1
        %s423 = scalar_select %p422, %s18, 1
        %s424 = scalar_lea.vmem %s5, %s423
      $region60: #{st_conv_block.8} parent=47 // pred_fallthru
        _
    $region48: #{st_conv_block.8} parent=5 // pred_fallthru
      _
  $region6: #{st_conv_block.8} parent=0 // loop_footer
    %s16 = sadd.s32 1, %s12
  $region7: #{st_conv_block.8} parent=0 // loop_footer_branch
    %11 = sbr.rel target = $region3
  $region8: #{st_conv_block.8} parent=0 // loop_exit
    _

</llo_original>
